<compile_context>
chip_gen: v6e
topology: v6e:2x2x1
jax: 0.10.0
libtpu: 0.0.40
codegen_flags: <defaults>
</compile_context>

<pallas_src>
import functools

import jax
import jax.numpy as jnp
from jax.experimental import pallas as pl
from jax.experimental.pallas import tpu as pltpu


# ------------------------------ kernel -------------------------------------- #

def _mha_kernel(*refs, num_heads, depth, embed_dim, has_mask):
    """Fused MHA for one batch element.

    refs = (x, [mask], wqkv, bqkv, wd, bd, out, attn_weights)
    """
    if has_mask:
        (x_ref, mask_ref, wqkv_ref, bqkv_ref, wd_ref, bd_ref,
         out_ref, attn_ref) = refs
    else:
        (x_ref, wqkv_ref, bqkv_ref, wd_ref, bd_ref, out_ref, attn_ref) = refs
        mask_ref = None

    x = x_ref[0].astype(jnp.float32)                       # (S, E)
    seq_len = x.shape[0]
    E = embed_dim

    # Fused Q/K/V projection: one wide MXU dot, weights resident in VMEM.
    qkv = (jnp.dot(x, wqkv_ref[...], preferred_element_type=jnp.float32)
           + bqkv_ref[...])                                # (S, 3E)
    q = qkv[:, 0 * E:1 * E]                                # (S, E)
    k = qkv[:, 1 * E:2 * E]
    v = qkv[:, 2 * E:3 * E]

    wd = wd_ref[...]                                       # (E, E)
    scale = jnp.float32(1.0 / (depth ** 0.5))

    if has_mask:
        # (1, S) key mask, broadcast over query rows; identical for all heads.
        neg_bias = mask_ref[0].astype(jnp.float32) * jnp.float32(-1e9)

    # Head concat + output projection expressed as a sum over heads:
    #   concat_h(ctx_h) @ Wd == sum_h ctx_h @ Wd[h*D:(h+1)*D, :]
    acc = jnp.zeros((seq_len, E), jnp.float32)

    for h in range(num_heads):                             # static unroll
        lo = h * depth
        qh = q[:, lo:lo + depth]                           # (S, D)
        kh = k[:, lo:lo + depth]
        vh = v[:, lo:lo + depth]

        # scores = qh @ kh^T / sqrt(D)
        scores = jax.lax.dot_general(
            qh, kh, (((1,), (1,)), ((), ())),
            preferred_element_type=jnp.float32) * scale     # (S, S)
        if has_mask:
            scores = scores + neg_bias

        # Numerically stable softmax over keys.
        m = jnp.max(scores, axis=-1, keepdims=True)
        p = jnp.exp(scores - m)
        attn = p / jnp.sum(p, axis=-1, keepdims=True)       # (S, S)

        attn_ref[0, h] = attn.astype(attn_ref.dtype)

        ctx = jnp.dot(attn, vh, preferred_element_type=jnp.float32)  # (S, D)
        acc = acc + jnp.dot(ctx, wd[lo:lo + depth, :],
                            preferred_element_type=jnp.float32)

    out_ref[0] = (acc + bd_ref[...]).astype(out_ref.dtype)


# ------------------------------ wrapper -------------------------------------- #

def multi_head_attention(x, params, mask=None, *, num_heads):
    """x: (B, S, E) float32; mask: optional (B, S) {0,1} (1 = masked out)."""
    B, S, E = x.shape
    assert E % num_heads == 0
    D = E // num_heads
    has_mask = mask is not None

    # Fuse the three projection weights into one (E, 3E) operand (one wide dot
    # on the MXU, and one resident VMEM tile instead of three).
    wqkv = jnp.concatenate([params["wq"], params["wk"], params["wv"]], axis=1)
    bqkv = jnp.concatenate([params["bq"], params["bk"], params["bv"]], axis=1)

    kernel = functools.partial(_mha_kernel, num_heads=num_heads, depth=D,
                               embed_dim=E, has_mask=has_mask)

    wqkv_spec = pl.BlockSpec((E, 3 * E), lambda b: (0, 0))  # resident weights
    bqkv_spec = pl.BlockSpec((1, 3 * E), lambda b: (0, 0))
    wd_spec = pl.BlockSpec((E, E), lambda b: (0, 0))
    bd_spec = pl.BlockSpec((1, E), lambda b: (0, 0))

    in_specs = [pl.BlockSpec((1, S, E), lambda b: (b, 0, 0))]
    inputs = [x]
    if has_mask:
        mask3 = mask.reshape(B, 1, S).astype(jnp.float32)
        in_specs.append(pl.BlockSpec((1, 1, S), lambda b: (b, 0, 0)))
        inputs.append(mask3)
    in_specs += [wqkv_spec, bqkv_spec, wd_spec, bd_spec]
    inputs += [wqkv, bqkv, params["wd"], params["bd"]]

    out_shape = (jax.ShapeDtypeStruct((B, S, E), x.dtype),
                 jax.ShapeDtypeStruct((B, num_heads, S, S), jnp.float32))
    out_specs = (pl.BlockSpec((1, S, E), lambda b: (b, 0, 0)),
                 pl.BlockSpec((1, num_heads, S, S), lambda b: (b, 0, 0, 0)))

    flops = 8 * B * S * E * E + 4 * B * num_heads * S * S * D
    transcendentals = B * num_heads * S * S
    bytes_accessed = 4 * (2 * B * S * E + 4 * E * E + 4 * E
                          + B * num_heads * S * S + (B * S if has_mask else 0))

    return pl.pallas_call(
        kernel,
        out_shape=out_shape,
        grid_spec=pltpu.PrefetchScalarGridSpec(
            num_scalar_prefetch=0,
            grid=(B,),
            in_specs=in_specs,
            out_specs=out_specs,
        ),
        compiler_params=pltpu.CompilerParams(
            dimension_semantics=("parallel",)),
        cost_estimate=pl.CostEstimate(flops=flops,
                                      transcendentals=transcendentals,
                                      bytes_accessed=bytes_accessed),
    )(*inputs)


# ------------------------------ reference ------------------------------------ #

def mha_reference(x, params, mask=None, *, num_heads):
    B, S, E = x.shape
    D = E // num_heads
    q = x @ params["wq"] + params["bq"]
    k = x @ params["wk"] + params["bk"]
    v = x @ params["wv"] + params["bv"]

    def split(t):
        return t.reshape(B, S, num_heads, D).transpose(0, 2, 1, 3)

    q, k, v = split(q), split(k), split(v)
    logits = jnp.einsum("bhqd,bhkd->bhqk", q, k) / jnp.sqrt(jnp.float32(D))
    if mask is not None:
        logits = logits + mask[:, None, None, :] * (-1e9)
    attn = jax.nn.softmax(logits, axis=-1)
    ctx = jnp.einsum("bhqk,bhkd->bhqd", attn, v)
    ctx = ctx.transpose(0, 2, 1, 3).reshape(B, S, E)
    out = ctx @ params["wd"] + params["bd"]
    return out, attn


# ------------------------------ demo ----------------------------------------- #

if __name__ == "__main__":
    key = jax.random.PRNGKey(0)
    batch, seq, embed_dim, num_heads = 2, 8, 32, 4

    ks = jax.random.split(key, 11)
    x = jax.random.normal(ks[0], (batch, seq, embed_dim), jnp.float32)
    # Weights stored as (in, out) == PyTorch nn.Linear weight transposed.
    params = dict(
        wq=0.1 * jax.random.normal(ks[1], (embed_dim, embed_dim), jnp.float32),
        wk=0.1 * jax.random.normal(ks[2], (embed_dim, embed_dim), jnp.float32),
        wv=0.1 * jax.random.normal(ks[3], (embed_dim, embed_dim), jnp.float32),
        wd=0.1 * jax.random.normal(ks[4], (embed_dim, embed_dim), jnp.float32),
        bq=0.1 * jax.random.normal(ks[5], (1, embed_dim), jnp.float32),
        bk=0.1 * jax.random.normal(ks[6], (1, embed_dim), jnp.float32),
        bv=0.1 * jax.random.normal(ks[7], (1, embed_dim), jnp.float32),
        bd=0.1 * jax.random.normal(ks[8], (1, embed_dim), jnp.float32),
    )
    mask = (jax.random.uniform(ks[9], (batch, seq)) > 0.7).astype(jnp.float32)

    mha = jax.jit(functools.partial(multi_head_attention, num_heads=num_heads))

    # Path 1: no mask.
    out, attn = mha(x, params)
    out, attn = jax.block_until_ready((out, attn))
    ref_out, ref_attn = mha_reference(x, params, num_heads=num_heads)
    assert out.shape == (batch, seq, embed_dim), out.shape
    assert attn.shape == (batch, num_heads, seq, seq), attn.shape
    assert jnp.allclose(out, ref_out, atol=1e-4, rtol=1e-4)
    assert jnp.allclose(attn, ref_attn, atol=1e-4, rtol=1e-4)

    # Path 2: with key mask (mask == 1 -> masked out), as in the PyTorch module.
    out_m, attn_m = mha(x, params, mask)
    out_m, attn_m = jax.block_until_ready((out_m, attn_m))
    ref_out_m, ref_attn_m = mha_reference(x, params, mask, num_heads=num_heads)
    assert jnp.allclose(out_m, ref_out_m, atol=1e-4, rtol=1e-4)
    assert jnp.allclose(attn_m, ref_attn_m, atol=1e-4, rtol=1e-4)

    print("KERNEL_OK")
</pallas_src>

<mosaic_0001>
module attributes {stable_mosaic.version = 11 : i64} {
  func.func @_mha_kernel(%arg0: i32, %arg1: memref<1x8x32xf32, #tpu.memory_space<vmem>>, %arg2: memref<32x96xf32, #tpu.memory_space<vmem>>, %arg3: memref<1x96xf32, #tpu.memory_space<vmem>>, %arg4: memref<32x32xf32, #tpu.memory_space<vmem>>, %arg5: memref<1x32xf32, #tpu.memory_space<vmem>>, %arg6: memref<1x8x32xf32, #tpu.memory_space<vmem>>, %arg7: memref<1x4x8x8xf32, #tpu.memory_space<vmem>>) attributes {dimension_semantics = [#tpu.dimension_semantics<parallel>], iteration_bounds = array<i64: 2>, scalar_prefetch = 0 : i64, scratch_operands = 0 : i64, tpu.core_type = #tpu.core_type<tc>, window_params = [{transform_indices = @transform_0, window_bounds = array<i64: 1, 8, 32>}, {pipeline_mode = #tpu.pipeline_mode<synchronous>, transform_indices = @transform_1, window_bounds = array<i64: 32, 96>}, {pipeline_mode = #tpu.pipeline_mode<synchronous>, transform_indices = @transform_2, window_bounds = array<i64: 1, 96>}, {pipeline_mode = #tpu.pipeline_mode<synchronous>, transform_indices = @transform_3, window_bounds = array<i64: 32, 32>}, {pipeline_mode = #tpu.pipeline_mode<synchronous>, transform_indices = @transform_4, window_bounds = array<i64: 1, 32>}, {transform_indices = @transform_5, window_bounds = array<i64: 1, 8, 32>}, {transform_indices = @transform_6, window_bounds = array<i64: 1, 4, 8, 8>}]} {
    %c0 = arith.constant 0 : index
    %c0_0 = arith.constant 0 : index
    %c0_1 = arith.constant 0 : index
    %0 = vector.load %arg1[%c0, %c0_0, %c0_1] : memref<1x8x32xf32, #tpu.memory_space<vmem>>, vector<1x8x32xf32>
    %1 = vector.shape_cast %0 : vector<1x8x32xf32> to vector<8x32xf32>
    %c0_2 = arith.constant 0 : index
    %c0_3 = arith.constant 0 : index
    %2 = vector.load %arg2[%c0_2, %c0_3] : memref<32x96xf32, #tpu.memory_space<vmem>>, vector<32x96xf32>
    %cst = arith.constant dense<0.000000e+00> : vector<8x96xf32>
    %3 = tpu.matmul %1, %2, %cst {dimension_numbers = #tpu.dot_dimension_numbers<[1], [0], [0], [1], [0, 0, 1, 1], [], []>} : vector<8x32xf32>, vector<32x96xf32>, vector<8x96xf32> -> vector<8x96xf32>
    %c0_4 = arith.constant 0 : index
    %c0_5 = arith.constant 0 : index
    %4 = vector.load %arg3[%c0_4, %c0_5] : memref<1x96xf32, #tpu.memory_space<vmem>>, vector<1x96xf32>
    %5 = vector.broadcast %4 : vector<1x96xf32> to vector<8x96xf32>
    %6 = arith.addf %3, %5 : vector<8x96xf32>
    %7 = vector.extract_strided_slice %6 {offsets = [0, 0], sizes = [8, 32], strides = [1, 1]} : vector<8x96xf32> to vector<8x32xf32>
    %8 = vector.extract_strided_slice %6 {offsets = [0, 32], sizes = [8, 32], strides = [1, 1]} : vector<8x96xf32> to vector<8x32xf32>
    %9 = vector.extract_strided_slice %6 {offsets = [0, 64], sizes = [8, 32], strides = [1, 1]} : vector<8x96xf32> to vector<8x32xf32>
    %c0_6 = arith.constant 0 : index
    %c0_7 = arith.constant 0 : index
    %10 = vector.load %arg4[%c0_6, %c0_7] : memref<32x32xf32, #tpu.memory_space<vmem>>, vector<32x32xf32>
    %cst_8 = arith.constant 0.000000e+00 : f32
    %11 = vector.broadcast %cst_8 : f32 to vector<8x32xf32>
    %12 = vector.extract_strided_slice %7 {offsets = [0, 0], sizes = [8, 8], strides = [1, 1]} : vector<8x32xf32> to vector<8x8xf32>
    %13 = vector.extract_strided_slice %8 {offsets = [0, 0], sizes = [8, 8], strides = [1, 1]} : vector<8x32xf32> to vector<8x8xf32>
    %14 = vector.extract_strided_slice %9 {offsets = [0, 0], sizes = [8, 8], strides = [1, 1]} : vector<8x32xf32> to vector<8x8xf32>
    %cst_9 = arith.constant dense<0.000000e+00> : vector<8x8xf32>
    %15 = tpu.matmul %12, %13, %cst_9 {dimension_numbers = #tpu.dot_dimension_numbers<[1], [1], [0], [0], [0, 0, 1, 0], [], []>} : vector<8x8xf32>, vector<8x8xf32>, vector<8x8xf32> -> vector<8x8xf32>
    %cst_10 = arith.constant 0.353553385 : f32
    %16 = vector.broadcast %cst_10 : f32 to vector<8x8xf32>
    %17 = arith.mulf %15, %16 : vector<8x8xf32>
    %cst_11 = arith.constant dense<0xFF800000> : vector<8xf32>
    %18 = vector.multi_reduction <maximumf>, %17, %cst_11 [1] : vector<8x8xf32> to vector<8xf32>
    %19 = vector.shape_cast %18 : vector<8xf32> to vector<8x1xf32>
    %20 = vector.broadcast %19 : vector<8x1xf32> to vector<8x8xf32>
    %21 = arith.subf %17, %20 : vector<8x8xf32>
    %22 = math.exp %21 : vector<8x8xf32>
    %cst_12 = arith.constant dense<0.000000e+00> : vector<8xf32>
    %23 = vector.multi_reduction <add>, %22, %cst_12 [1] : vector<8x8xf32> to vector<8xf32>
    %24 = vector.shape_cast %23 : vector<8xf32> to vector<8x1xf32>
    %25 = vector.broadcast %24 : vector<8x1xf32> to vector<8x8xf32>
    %26 = arith.divf %22, %25 : vector<8x8xf32>
    %c0_13 = arith.constant 0 : index
    %c0_14 = arith.constant 0 : index
    %c0_15 = arith.constant 0 : index
    %c0_16 = arith.constant 0 : index
    %27 = vector.load %arg7[%c0_13, %c0_14, %c0_15, %c0_16] : memref<1x4x8x8xf32, #tpu.memory_space<vmem>>, vector<1x1x8x8xf32>
    %28 = vector.shape_cast %27 : vector<1x1x8x8xf32> to vector<8x8xf32>
    %29 = vector.shape_cast %26 : vector<8x8xf32> to vector<1x1x8x8xf32>
    tpu.vector_store %arg7[%c0_13, %c0_14, %c0_15, %c0_16], %29 {strides = array<i32>} : memref<1x4x8x8xf32, #tpu.memory_space<vmem>>, vector<1x1x8x8xf32>,
    %cst_17 = arith.constant dense<0.000000e+00> : vector<8x8xf32>
    %30 = tpu.matmul %26, %14, %cst_17 {dimension_numbers = #tpu.dot_dimension_numbers<[1], [0], [0], [1], [0, 0, 1, 1], [], []>} : vector<8x8xf32>, vector<8x8xf32>, vector<8x8xf32> -> vector<8x8xf32>
    %31 = vector.extract_strided_slice %10 {offsets = [0, 0], sizes = [8, 32], strides = [1, 1]} : vector<32x32xf32> to vector<8x32xf32>
    %cst_18 = arith.constant dense<0.000000e+00> : vector<8x32xf32>
    %32 = tpu.matmul %30, %31, %cst_18 {dimension_numbers = #tpu.dot_dimension_numbers<[1], [0], [0], [1], [0, 0, 1, 1], [], []>} : vector<8x8xf32>, vector<8x32xf32>, vector<8x32xf32> -> vector<8x32xf32>
    %33 = arith.addf %11, %32 : vector<8x32xf32>
    %34 = vector.extract_strided_slice %7 {offsets = [0, 8], sizes = [8, 8], strides = [1, 1]} : vector<8x32xf32> to vector<8x8xf32>
    %35 = vector.extract_strided_slice %8 {offsets = [0, 8], sizes = [8, 8], strides = [1, 1]} : vector<8x32xf32> to vector<8x8xf32>
    %36 = vector.extract_strided_slice %9 {offsets = [0, 8], sizes = [8, 8], strides = [1, 1]} : vector<8x32xf32> to vector<8x8xf32>
    %cst_19 = arith.constant dense<0.000000e+00> : vector<8x8xf32>
    %37 = tpu.matmul %34, %35, %cst_19 {dimension_numbers = #tpu.dot_dimension_numbers<[1], [1], [0], [0], [0, 0, 1, 0], [], []>} : vector<8x8xf32>, vector<8x8xf32>, vector<8x8xf32> -> vector<8x8xf32>
    %cst_20 = arith.constant 0.353553385 : f32
    %38 = vector.broadcast %cst_20 : f32 to vector<8x8xf32>
    %39 = arith.mulf %37, %38 : vector<8x8xf32>
    %cst_21 = arith.constant dense<0xFF800000> : vector<8xf32>
    %40 = vector.multi_reduction <maximumf>, %39, %cst_21 [1] : vector<8x8xf32> to vector<8xf32>
    %41 = vector.shape_cast %40 : vector<8xf32> to vector<8x1xf32>
    %42 = vector.broadcast %41 : vector<8x1xf32> to vector<8x8xf32>
    %43 = arith.subf %39, %42 : vector<8x8xf32>
    %44 = math.exp %43 : vector<8x8xf32>
    %cst_22 = arith.constant dense<0.000000e+00> : vector<8xf32>
    %45 = vector.multi_reduction <add>, %44, %cst_22 [1] : vector<8x8xf32> to vector<8xf32>
    %46 = vector.shape_cast %45 : vector<8xf32> to vector<8x1xf32>
    %47 = vector.broadcast %46 : vector<8x1xf32> to vector<8x8xf32>
    %48 = arith.divf %44, %47 : vector<8x8xf32>
    %c0_23 = arith.constant 0 : index
    %c1 = arith.constant 1 : index
    %c0_24 = arith.constant 0 : index
    %c0_25 = arith.constant 0 : index
    %49 = vector.load %arg7[%c0_23, %c1, %c0_24, %c0_25] : memref<1x4x8x8xf32, #tpu.memory_space<vmem>>, vector<1x1x8x8xf32>
    %50 = vector.shape_cast %49 : vector<1x1x8x8xf32> to vector<8x8xf32>
    %51 = vector.shape_cast %48 : vector<8x8xf32> to vector<1x1x8x8xf32>
    tpu.vector_store %arg7[%c0_23, %c1, %c0_24, %c0_25], %51 {strides = array<i32>} : memref<1x4x8x8xf32, #tpu.memory_space<vmem>>, vector<1x1x8x8xf32>,
    %cst_26 = arith.constant dense<0.000000e+00> : vector<8x8xf32>
    %52 = tpu.matmul %48, %36, %cst_26 {dimension_numbers = #tpu.dot_dimension_numbers<[1], [0], [0], [1], [0, 0, 1, 1], [], []>} : vector<8x8xf32>, vector<8x8xf32>, vector<8x8xf32> -> vector<8x8xf32>
    %53 = vector.extract_strided_slice %10 {offsets = [8, 0], sizes = [8, 32], strides = [1, 1]} : vector<32x32xf32> to vector<8x32xf32>
    %cst_27 = arith.constant dense<0.000000e+00> : vector<8x32xf32>
    %54 = tpu.matmul %52, %53, %cst_27 {dimension_numbers = #tpu.dot_dimension_numbers<[1], [0], [0], [1], [0, 0, 1, 1], [], []>} : vector<8x8xf32>, vector<8x32xf32>, vector<8x32xf32> -> vector<8x32xf32>
    %55 = arith.addf %33, %54 : vector<8x32xf32>
    %56 = vector.extract_strided_slice %7 {offsets = [0, 16], sizes = [8, 8], strides = [1, 1]} : vector<8x32xf32> to vector<8x8xf32>
    %57 = vector.extract_strided_slice %8 {offsets = [0, 16], sizes = [8, 8], strides = [1, 1]} : vector<8x32xf32> to vector<8x8xf32>
    %58 = vector.extract_strided_slice %9 {offsets = [0, 16], sizes = [8, 8], strides = [1, 1]} : vector<8x32xf32> to vector<8x8xf32>
    %cst_28 = arith.constant dense<0.000000e+00> : vector<8x8xf32>
    %59 = tpu.matmul %56, %57, %cst_28 {dimension_numbers = #tpu.dot_dimension_numbers<[1], [1], [0], [0], [0, 0, 1, 0], [], []>} : vector<8x8xf32>, vector<8x8xf32>, vector<8x8xf32> -> vector<8x8xf32>
    %cst_29 = arith.constant 0.353553385 : f32
    %60 = vector.broadcast %cst_29 : f32 to vector<8x8xf32>
    %61 = arith.mulf %59, %60 : vector<8x8xf32>
    %cst_30 = arith.constant dense<0xFF800000> : vector<8xf32>
    %62 = vector.multi_reduction <maximumf>, %61, %cst_30 [1] : vector<8x8xf32> to vector<8xf32>
    %63 = vector.shape_cast %62 : vector<8xf32> to vector<8x1xf32>
    %64 = vector.broadcast %63 : vector<8x1xf32> to vector<8x8xf32>
    %65 = arith.subf %61, %64 : vector<8x8xf32>
    %66 = math.exp %65 : vector<8x8xf32>
    %cst_31 = arith.constant dense<0.000000e+00> : vector<8xf32>
    %67 = vector.multi_reduction <add>, %66, %cst_31 [1] : vector<8x8xf32> to vector<8xf32>
    %68 = vector.shape_cast %67 : vector<8xf32> to vector<8x1xf32>
    %69 = vector.broadcast %68 : vector<8x1xf32> to vector<8x8xf32>
    %70 = arith.divf %66, %69 : vector<8x8xf32>
    %c0_32 = arith.constant 0 : index
    %c2 = arith.constant 2 : index
    %c0_33 = arith.constant 0 : index
    %c0_34 = arith.constant 0 : index
    %71 = vector.load %arg7[%c0_32, %c2, %c0_33, %c0_34] : memref<1x4x8x8xf32, #tpu.memory_space<vmem>>, vector<1x1x8x8xf32>
    %72 = vector.shape_cast %71 : vector<1x1x8x8xf32> to vector<8x8xf32>
    %73 = vector.shape_cast %70 : vector<8x8xf32> to vector<1x1x8x8xf32>
    tpu.vector_store %arg7[%c0_32, %c2, %c0_33, %c0_34], %73 {strides = array<i32>} : memref<1x4x8x8xf32, #tpu.memory_space<vmem>>, vector<1x1x8x8xf32>,
    %cst_35 = arith.constant dense<0.000000e+00> : vector<8x8xf32>
    %74 = tpu.matmul %70, %58, %cst_35 {dimension_numbers = #tpu.dot_dimension_numbers<[1], [0], [0], [1], [0, 0, 1, 1], [], []>} : vector<8x8xf32>, vector<8x8xf32>, vector<8x8xf32> -> vector<8x8xf32>
    %75 = vector.extract_strided_slice %10 {offsets = [16, 0], sizes = [8, 32], strides = [1, 1]} : vector<32x32xf32> to vector<8x32xf32>
    %cst_36 = arith.constant dense<0.000000e+00> : vector<8x32xf32>
    %76 = tpu.matmul %74, %75, %cst_36 {dimension_numbers = #tpu.dot_dimension_numbers<[1], [0], [0], [1], [0, 0, 1, 1], [], []>} : vector<8x8xf32>, vector<8x32xf32>, vector<8x32xf32> -> vector<8x32xf32>
    %77 = arith.addf %55, %76 : vector<8x32xf32>
    %78 = vector.extract_strided_slice %7 {offsets = [0, 24], sizes = [8, 8], strides = [1, 1]} : vector<8x32xf32> to vector<8x8xf32>
    %79 = vector.extract_strided_slice %8 {offsets = [0, 24], sizes = [8, 8], strides = [1, 1]} : vector<8x32xf32> to vector<8x8xf32>
    %80 = vector.extract_strided_slice %9 {offsets = [0, 24], sizes = [8, 8], strides = [1, 1]} : vector<8x32xf32> to vector<8x8xf32>
    %cst_37 = arith.constant dense<0.000000e+00> : vector<8x8xf32>
    %81 = tpu.matmul %78, %79, %cst_37 {dimension_numbers = #tpu.dot_dimension_numbers<[1], [1], [0], [0], [0, 0, 1, 0], [], []>} : vector<8x8xf32>, vector<8x8xf32>, vector<8x8xf32> -> vector<8x8xf32>
    %cst_38 = arith.constant 0.353553385 : f32
    %82 = vector.broadcast %cst_38 : f32 to vector<8x8xf32>
    %83 = arith.mulf %81, %82 : vector<8x8xf32>
    %cst_39 = arith.constant dense<0xFF800000> : vector<8xf32>
    %84 = vector.multi_reduction <maximumf>, %83, %cst_39 [1] : vector<8x8xf32> to vector<8xf32>
    %85 = vector.shape_cast %84 : vector<8xf32> to vector<8x1xf32>
    %86 = vector.broadcast %85 : vector<8x1xf32> to vector<8x8xf32>
    %87 = arith.subf %83, %86 : vector<8x8xf32>
    %88 = math.exp %87 : vector<8x8xf32>
    %cst_40 = arith.constant dense<0.000000e+00> : vector<8xf32>
    %89 = vector.multi_reduction <add>, %88, %cst_40 [1] : vector<8x8xf32> to vector<8xf32>
    %90 = vector.shape_cast %89 : vector<8xf32> to vector<8x1xf32>
    %91 = vector.broadcast %90 : vector<8x1xf32> to vector<8x8xf32>
    %92 = arith.divf %88, %91 : vector<8x8xf32>
    %c0_41 = arith.constant 0 : index
    %c3 = arith.constant 3 : index
    %c0_42 = arith.constant 0 : index
    %c0_43 = arith.constant 0 : index
    %93 = vector.load %arg7[%c0_41, %c3, %c0_42, %c0_43] : memref<1x4x8x8xf32, #tpu.memory_space<vmem>>, vector<1x1x8x8xf32>
    %94 = vector.shape_cast %93 : vector<1x1x8x8xf32> to vector<8x8xf32>
    %95 = vector.shape_cast %92 : vector<8x8xf32> to vector<1x1x8x8xf32>
    tpu.vector_store %arg7[%c0_41, %c3, %c0_42, %c0_43], %95 {strides = array<i32>} : memref<1x4x8x8xf32, #tpu.memory_space<vmem>>, vector<1x1x8x8xf32>,
    %cst_44 = arith.constant dense<0.000000e+00> : vector<8x8xf32>
    %96 = tpu.matmul %92, %80, %cst_44 {dimension_numbers = #tpu.dot_dimension_numbers<[1], [0], [0], [1], [0, 0, 1, 1], [], []>} : vector<8x8xf32>, vector<8x8xf32>, vector<8x8xf32> -> vector<8x8xf32>
    %97 = vector.extract_strided_slice %10 {offsets = [24, 0], sizes = [8, 32], strides = [1, 1]} : vector<32x32xf32> to vector<8x32xf32>
    %cst_45 = arith.constant dense<0.000000e+00> : vector<8x32xf32>
    %98 = tpu.matmul %96, %97, %cst_45 {dimension_numbers = #tpu.dot_dimension_numbers<[1], [0], [0], [1], [0, 0, 1, 1], [], []>} : vector<8x8xf32>, vector<8x32xf32>, vector<8x32xf32> -> vector<8x32xf32>
    %99 = arith.addf %77, %98 : vector<8x32xf32>
    %c0_46 = arith.constant 0 : index
    %c0_47 = arith.constant 0 : index
    %100 = vector.load %arg5[%c0_46, %c0_47] : memref<1x32xf32, #tpu.memory_space<vmem>>, vector<1x32xf32>
    %101 = vector.broadcast %100 : vector<1x32xf32> to vector<8x32xf32>
    %102 = arith.addf %99, %101 : vector<8x32xf32>
    %c0_48 = arith.constant 0 : index
    %c0_49 = arith.constant 0 : index
    %c0_50 = arith.constant 0 : index
    %103 = vector.load %arg6[%c0_48, %c0_49, %c0_50] : memref<1x8x32xf32, #tpu.memory_space<vmem>>, vector<1x8x32xf32>
    %104 = vector.shape_cast %103 : vector<1x8x32xf32> to vector<8x32xf32>
    %105 = vector.shape_cast %102 : vector<8x32xf32> to vector<1x8x32xf32>
    tpu.vector_store %arg6[%c0_48, %c0_49, %c0_50], %105 {strides = array<i32>} : memref<1x8x32xf32, #tpu.memory_space<vmem>>, vector<1x8x32xf32>,
    return
  }
  func.func @transform_0(%arg0: i32) -> (i32, i32, i32) {
    %c0_i32 = arith.constant 0 : i32
    %c0_i32_0 = arith.constant 0 : i32
    %c0_i32_1 = arith.constant 0 : i32
    return %arg0, %c0_i32, %c0_i32_0 : i32, i32, i32
  }
  func.func @transform_1(%arg0: i32) -> (i32, i32) {
    %c0_i32 = arith.constant 0 : i32
    %c0_i32_0 = arith.constant 0 : i32
    %c0_i32_1 = arith.constant 0 : i32
    return %c0_i32, %c0_i32_0 : i32, i32
  }
  func.func @transform_2(%arg0: i32) -> (i32, i32) {
    %c0_i32 = arith.constant 0 : i32
    %c0_i32_0 = arith.constant 0 : i32
    %c0_i32_1 = arith.constant 0 : i32
    return %c0_i32, %c0_i32_0 : i32, i32
  }
  func.func @transform_3(%arg0: i32) -> (i32, i32) {
    %c0_i32 = arith.constant 0 : i32
    %c0_i32_0 = arith.constant 0 : i32
    %c0_i32_1 = arith.constant 0 : i32
    return %c0_i32, %c0_i32_0 : i32, i32
  }
  func.func @transform_4(%arg0: i32) -> (i32, i32) {
    %c0_i32 = arith.constant 0 : i32
    %c0_i32_0 = arith.constant 0 : i32
    %c0_i32_1 = arith.constant 0 : i32
    return %c0_i32, %c0_i32_0 : i32, i32
  }
  func.func @transform_5(%arg0: i32) -> (i32, i32, i32) {
    %c0_i32 = arith.constant 0 : i32
    %c0_i32_0 = arith.constant 0 : i32
    %c0_i32_1 = arith.constant 0 : i32
    return %arg0, %c0_i32, %c0_i32_0 : i32, i32, i32
  }
  func.func @transform_6(%arg0: i32) -> (i32, i32, i32, i32) {
    %c0_i32 = arith.constant 0 : i32
    %c0_i32_0 = arith.constant 0 : i32
    %c0_i32_1 = arith.constant 0 : i32
    %c0_i32_2 = arith.constant 0 : i32
    return %arg0, %c0_i32, %c0_i32_0, %c0_i32_1 : i32, i32, i32, i32
  }
}

</mosaic_0001>

<llo_original>
// kernel: multi_head_attention.1
$region0: #{multi_head_attention.1}
  #allocation0 [shape = 'u32[]', space=smem, size = 0x4, offset = 0x4, fixed_abs, tag = 'smem constant byte address 0x4 - core index']
  #allocation1 [shape = 'u32[144,128]{1,0:T(1,128)}', space=vmem, size = 0x12000, scoped, tag = 'internal scratch']
  %s0 = inlined_call_operand.vmem [shape: f32[2,8,32], index: 0, kind: input, shape index: {}]
  %s1 = inlined_call_operand.vmem [shape: f32[32,96], index: 1, kind: input, shape index: {}]
  %s2 = inlined_call_operand.vmem [shape: f32[1,96], index: 2, kind: input, shape index: {}]
  %s3 = inlined_call_operand.vmem [shape: f32[32,32], index: 3, kind: input, shape index: {}]
  %s4 = inlined_call_operand.vmem [shape: f32[1,32], index: 4, kind: input, shape index: {}]
  %s5 = inlined_call_operand.hbm [shape: f32[2,8,32], index: 5, kind: output, shape index: {0}]
  %s6 = inlined_call_operand.hbm [shape: f32[2,4,8,8], index: 6, kind: output, shape index: {1}]
  %7 = xla_tuple %s5, %s6
  %s8 = sld [smem:[#allocation0]]
  $region61: #{multi_head_attention.1} parent=0
    _
  %s10 = ssub.s32 1, %s8
  %s11 = scalar_select 0, %s10, %s8
  $region1: #{multi_head_attention.1} parent=0
    #allocation2 [shape = 'u8[8192]{0}', space=vmem, size = 0x2000, scoped, tag = 'output window, operand 0']
    #allocation3 [shape = 's32[2]{0}', space=sflag, size = 0x8, scoped, tag = 'scoped memory for multi_head_attention.1']
    #allocation4 [shape = 'u8[32768]{0}', space=vmem, size = 0x8000, scoped, tag = 'output window, operand 1']
    #allocation5 [shape = 's32[2]{0}', space=sflag, size = 0x8, scoped, tag = 'scoped memory for multi_head_attention.1']
    %12 = vsyncpa [#allocation3], 0
    %s13 = scalar_lea.sflag [#allocation3], 1
    %14 = vsyncpa %s13, 0
    %15 = vsyncpa [#allocation5], 0
    %s16 = scalar_lea.sflag [#allocation5], 1
    %17 = vsyncpa %s16, 0
    loop: start=0, step=1, limit=4
    $region2: #{multi_head_attention.1} parent=1 // loop_pre_header
      _
    $region3: #{multi_head_attention.1} parent=1 // loop_header
      %s19 = sphi 0, %s23
      %p20 = scmp.ge.s32.totalorder %s19, 4
      %s29 = sphi 0, %s31
      %s32 = sphi 0, %s29
      %s33 = sphi 0, %s32
      %s49 = sphi 0, %s33
      %s53 = sphi 0, %s53
      %s55 = sphi 0, %s53
      %s56 = sphi 0, %s55
      %s70 = sphi 0, %s56
      %s74 = sphi 0, %s74
      %s76 = sphi 0, %s74
      %s77 = sphi 0, %s76
      %s91 = sphi 0, %s77
      %s95 = sphi 0, %s95
      %s97 = sphi 0, %s95
      %s98 = sphi 0, %s97
      %s112 = sphi 0, %s98
      %s116 = sphi 0, %s116
      %s118 = sphi 0, %s116
      %s119 = sphi 0, %s118
      %s133 = sphi 0, %s119
      %s139 = sphi 0, %s141
      %s142 = sphi 0, %s139
      %s143 = sphi 0, %s142
      %s159 = sphi 0, %s143
      %s165 = sphi 0, %s167
      %s168 = sphi 0, %s165
      %s169 = sphi 0, %s168
      %s185 = sphi 0, %s169
    $region4: #{multi_head_attention.1} parent=1 // loop_header_branch
      %22 = sbr.rel (%p20) target = $region8
    $region5: #{multi_head_attention.1} parent=1 // loop_body
      %s24 = ssub.s32 %s19, 1
      %s25 = ssub.s32 %s19, 2
      %s26 = sadd.s32 %s19, 1
      %s27 = ssub.s32 %s19, %s26
      %p28 = scmp.eq.s32.totalorder %s27, 0
      %s30 = sadd.s32 %s29, 1
      %s31 = scalar_select %p28, %s29, %s30
      %p34 = pneg %p28
      %p35 = scmp.eq.s32.totalorder %s19, 1
      %p36 = por %p34, %p35
      %p37 = scmp.ne.s32.totalorder %s29, %s32
      %p38 = scmp.eq.s32.totalorder %s19, 0
      %p39 = por %p37, %p38
      %p40 = scmp.ne.s32.totalorder %s29, %s32
      %p41 = scmp.eq.s32.totalorder %s24, 1
      %p42 = por %p40, %p41
      %p43 = scmp.ne.s32.totalorder %s32, %s33
      %p44 = scmp.eq.s32.totalorder %s24, 0
      %p45 = por %p43, %p44
      %p46 = scmp.ne.s32.totalorder %s32, %s33
      %p47 = scmp.eq.s32.totalorder %s25, 1
      %p48 = por %p46, %p47
      %p50 = scmp.ne.s32.totalorder %s33, %s49
      %p51 = scmp.eq.s32.totalorder %s25, 0
      %p52 = por %p50, %p51
      %s54 = sadd.s32 %s53, 1
      %p57 = scmp.eq.s32.totalorder %s19, 1
      %p58 = scmp.ne.s32.totalorder %s53, %s55
      %p59 = scmp.eq.s32.totalorder %s19, 0
      %p60 = por %p58, %p59
      %p61 = scmp.ne.s32.totalorder %s53, %s55
      %p62 = scmp.eq.s32.totalorder %s24, 1
      %p63 = por %p61, %p62
      %p64 = scmp.ne.s32.totalorder %s55, %s56
      %p65 = scmp.eq.s32.totalorder %s24, 0
      %p66 = por %p64, %p65
      %p67 = scmp.ne.s32.totalorder %s55, %s56
      %p68 = scmp.eq.s32.totalorder %s25, 1
      %p69 = por %p67, %p68
      %p71 = scmp.ne.s32.totalorder %s56, %s70
      %p72 = scmp.eq.s32.totalorder %s25, 0
      %p73 = por %p71, %p72
      %s75 = sadd.s32 %s74, 1
      %p78 = scmp.eq.s32.totalorder %s19, 1
      %p79 = scmp.ne.s32.totalorder %s74, %s76
      %p80 = scmp.eq.s32.totalorder %s19, 0
      %p81 = por %p79, %p80
      %p82 = scmp.ne.s32.totalorder %s74, %s76
      %p83 = scmp.eq.s32.totalorder %s24, 1
      %p84 = por %p82, %p83
      %p85 = scmp.ne.s32.totalorder %s76, %s77
      %p86 = scmp.eq.s32.totalorder %s24, 0
      %p87 = por %p85, %p86
      %p88 = scmp.ne.s32.totalorder %s76, %s77
      %p89 = scmp.eq.s32.totalorder %s25, 1
      %p90 = por %p88, %p89
      %p92 = scmp.ne.s32.totalorder %s77, %s91
      %p93 = scmp.eq.s32.totalorder %s25, 0
      %p94 = por %p92, %p93
      %s96 = sadd.s32 %s95, 1
      %p99 = scmp.eq.s32.totalorder %s19, 1
      %p100 = scmp.ne.s32.totalorder %s95, %s97
      %p101 = scmp.eq.s32.totalorder %s19, 0
      %p102 = por %p100, %p101
      %p103 = scmp.ne.s32.totalorder %s95, %s97
      %p104 = scmp.eq.s32.totalorder %s24, 1
      %p105 = por %p103, %p104
      %p106 = scmp.ne.s32.totalorder %s97, %s98
      %p107 = scmp.eq.s32.totalorder %s24, 0
      %p108 = por %p106, %p107
      %p109 = scmp.ne.s32.totalorder %s97, %s98
      %p110 = scmp.eq.s32.totalorder %s25, 1
      %p111 = por %p109, %p110
      %p113 = scmp.ne.s32.totalorder %s98, %s112
      %p114 = scmp.eq.s32.totalorder %s25, 0
      %p115 = por %p113, %p114
      %s117 = sadd.s32 %s116, 1
      %p120 = scmp.eq.s32.totalorder %s19, 1
      %p121 = scmp.ne.s32.totalorder %s116, %s118
      %p122 = scmp.eq.s32.totalorder %s19, 0
      %p123 = por %p121, %p122
      %p124 = scmp.ne.s32.totalorder %s116, %s118
      %p125 = scmp.eq.s32.totalorder %s24, 1
      %p126 = por %p124, %p125
      %p127 = scmp.ne.s32.totalorder %s118, %s119
      %p128 = scmp.eq.s32.totalorder %s24, 0
      %p129 = por %p127, %p128
      %p130 = scmp.ne.s32.totalorder %s118, %s119
      %p131 = scmp.eq.s32.totalorder %s25, 1
      %p132 = por %p130, %p131
      %p134 = scmp.ne.s32.totalorder %s119, %s133
      %p135 = scmp.eq.s32.totalorder %s25, 0
      %p136 = por %p134, %p135
      %s137 = ssub.s32 %s19, %s26
      %p138 = scmp.eq.s32.totalorder %s137, 0
      %s140 = sadd.s32 %s139, 1
      %s141 = scalar_select %p138, %s139, %s140
      %p144 = pneg %p138
      %p145 = scmp.eq.s32.totalorder %s19, 1
      %p146 = por %p144, %p145
      %p147 = scmp.ne.s32.totalorder %s139, %s142
      %p148 = scmp.eq.s32.totalorder %s19, 0
      %p149 = por %p147, %p148
      %p150 = scmp.ne.s32.totalorder %s139, %s142
      %p151 = scmp.eq.s32.totalorder %s24, 1
      %p152 = por %p150, %p151
      %p153 = scmp.ne.s32.totalorder %s142, %s143
      %p154 = scmp.eq.s32.totalorder %s24, 0
      %p155 = por %p153, %p154
      %p156 = scmp.ne.s32.totalorder %s142, %s143
      %p157 = scmp.eq.s32.totalorder %s25, 1
      %p158 = por %p156, %p157
      %p160 = scmp.ne.s32.totalorder %s143, %s159
      %p161 = scmp.eq.s32.totalorder %s25, 0
      %p162 = por %p160, %p161
      %s163 = ssub.s32 %s19, %s26
      %p164 = scmp.eq.s32.totalorder %s163, 0
      %s166 = sadd.s32 %s165, 1
      %s167 = scalar_select %p164, %s165, %s166
      %p170 = pneg %p164
      %p171 = scmp.eq.s32.totalorder %s19, 1
      %p172 = por %p170, %p171
      %p173 = scmp.ne.s32.totalorder %s165, %s168
      %p174 = scmp.eq.s32.totalorder %s19, 0
      %p175 = por %p173, %p174
      %p176 = scmp.ne.s32.totalorder %s165, %s168
      %p177 = scmp.eq.s32.totalorder %s24, 1
      %p178 = por %p176, %p177
      %p179 = scmp.ne.s32.totalorder %s168, %s169
      %p180 = scmp.eq.s32.totalorder %s24, 0
      %p181 = por %p179, %p180
      %p182 = scmp.ne.s32.totalorder %s168, %s169
      %p183 = scmp.eq.s32.totalorder %s25, 1
      %p184 = por %p182, %p183
      %p186 = scmp.ne.s32.totalorder %s169, %s185
      %p187 = scmp.eq.s32.totalorder %s25, 0
      %p188 = por %p186, %p187
      %p189 = scmp.le.s32.totalorder 1, %s19
      %p190 = scmp.lt.s32.totalorder %s19, 3
      %p191 = pnand %p189, %p190
      %p192 = pneg %p191
      // Predicated region
      $region9: #{multi_head_attention.1} parent=5 // pred_check
        _
      $region10: #{multi_head_attention.1} parent=5 // pred_check_branch
        %194 = sbr.rel (%p191) target = $region12
      $region11: #{multi_head_attention.1} parent=5 // pred_region
        %s195 = ssub.s32 %s19, 1
        // Predicated region
        $region13: #{multi_head_attention.1} parent=11 // pred_check
          %p196 = pneg %p66
        $region14: #{multi_head_attention.1} parent=11 // pred_check_branch
          %198 = sbr.rel (%p196) target = $region16
        $region15: #{multi_head_attention.1} parent=11 // pred_region
          _
        $region16: #{multi_head_attention.1} parent=11 // pred_fallthru
          _
        // Predicated region
        $region17: #{multi_head_attention.1} parent=11 // pred_check
          %p199 = pneg %p87
        $region18: #{multi_head_attention.1} parent=11 // pred_check_branch
          %201 = sbr.rel (%p199) target = $region20
        $region19: #{multi_head_attention.1} parent=11 // pred_region
          _
        $region20: #{multi_head_attention.1} parent=11 // pred_fallthru
          _
        // Predicated region
        $region21: #{multi_head_attention.1} parent=11 // pred_check
          %p202 = pneg %p108
        $region22: #{multi_head_attention.1} parent=11 // pred_check_branch
          %204 = sbr.rel (%p202) target = $region24
        $region23: #{multi_head_attention.1} parent=11 // pred_region
          _
        $region24: #{multi_head_attention.1} parent=11 // pred_fallthru
          _
        // Predicated region
        $region25: #{multi_head_attention.1} parent=11 // pred_check
          %p205 = pneg %p129
        $region26: #{multi_head_attention.1} parent=11 // pred_check_branch
          %207 = sbr.rel (%p205) target = $region28
        $region27: #{multi_head_attention.1} parent=11 // pred_region
          _
        $region28: #{multi_head_attention.1} parent=11 // pred_fallthru
          _
      $region12: #{multi_head_attention.1} parent=5 // pred_fallthru
        _
      %p208 = scmp.lt.s32.totalorder %s19, 2
      // Predicated region
      $region29: #{multi_head_attention.1} parent=5 // pred_check
        %p209 = pneg %p208
      $region30: #{multi_head_attention.1} parent=5 // pred_check_branch
        %211 = sbr.rel (%p209) target = $region32
      $region31: #{multi_head_attention.1} parent=5 // pred_region
        // Predicated region
        $region33: #{multi_head_attention.1} parent=31 // pred_check
          %p212 = pneg %p39
        $region34: #{multi_head_attention.1} parent=31 // pred_check_branch
          %214 = sbr.rel (%p212) target = $region36
        $region35: #{multi_head_attention.1} parent=31 // pred_region
          %p215 = scmp.lt.s32.totalorder %s19, 1
          %s216 = scalar_select %p215, %s19, 1
          %s217 = smul.addr %s216, 8
          %s218 = scalar_lea.vmem %s0, %s217
        $region36: #{multi_head_attention.1} parent=31 // pred_fallthru
          _
      $region32: #{multi_head_attention.1} parent=5 // pred_fallthru
        _
      %p219 = scmp.le.s32.totalorder 1, %s19
      %p220 = scmp.lt.s32.totalorder %s19, 3
      %p221 = pnand %p219, %p220
      %p222 = pneg %p221
      // Predicated region
      $region37: #{multi_head_attention.1} parent=5 // pred_check
        _
      $region38: #{multi_head_attention.1} parent=5 // pred_check_branch
        %224 = sbr.rel (%p221) target = $region40
      $region39: #{multi_head_attention.1} parent=5 // pred_region
        %s225 = ssub.s32 %s19, 1
        %p226 = scmp.lt.s32.totalorder %s24, 1
        %s227 = scalar_select %p226, %s24, 1
        %s228 = smul.addr %s227, 8
        %s229 = scalar_lea.vmem %s0, %s228
        %p230 = pneg %p45
        %p231 = pneg %p42
        %p232 = pneg %p66
        %p233 = pneg %p63
        %p234 = pneg %p87
        %p235 = pneg %p84
        %p236 = pneg %p108
        %p237 = pneg %p105
        %p238 = pneg %p129
        %p239 = pneg %p126
        %p240 = pneg %p155
        %p241 = pneg %p152
        %s242 = sand.u32 %s142, 1
        %s243 = scalar_lea.sflag [#allocation3], %s242
        %s244 = sand.u32 %s142, 1
        %s245 = smul.addr %s244, 8
        %s246 = scalar_lea.vmem [#allocation2], %s245
        %p247 = pneg %p181
        %p248 = pneg %p178
        %s249 = sand.u32 %s168, 1
        %s250 = scalar_lea.sflag [#allocation5], %s249
        %s251 = sand.u32 %s168, 1
        %s252 = smul.addr %s251, 32
        %s253 = scalar_lea.vmem [#allocation4], %s252
        %p254 = scmp.lt.s32.totalorder %s24, 1
        %s255 = scalar_select %p254, %s24, 1
        %s256 = smul.addr %s255, 8
        %s257 = scalar_lea.vmem %s0, %s256
        %v258 = vld [vmem:[%s257] sm:$0xff]
        %v259 = vld [vmem:[%s1] sm:$0xff]
        %v260 = vld [vmem:[%s1 + $0x8] sm:$0xff]
        %v261 = vld [vmem:[%s1 + $0x10] sm:$0xff]
        %v262 = vld [vmem:[%s1 + $0x18] sm:$0xff]
        %v263 = vld [vmem:[%s2] sm:$0x1]
        %v265 = vlaneseq
        %v266 = vshrl.u32 %v265, 7
        %v267 = vsub.s32 0, %v266
        %v268 = vrot.slane %v263, %v267
        %vm270 = vcmask 261120
        %v272 = vsel %vm270, %v258, 0
        %274 = vmatprep.subr.mxu0 0.0
        %275 = vmatpush1.msra.mxu0 0.0
        %276 = vmatprep.subr.mxu0 0.0
        %277 = vmatpush1.msra.mxu0 0.0
        %278 = vmatprep.subr.mxu0 0.0
        %279 = vmatpush1.msra.mxu0 0.0
        %280 = vmatprep.subr.mxu0 0.0
        %281 = vmatpush1.msra.mxu0 0.0
        %282 = vmatprep.subr.mxu0 0.0
        %283 = vmatpush1.msra.mxu0 0.0
        %284 = vmatprep.subr.mxu0 0.0
        %285 = vmatpush1.msra.mxu0 0.0
        %286 = vmatprep.subr.mxu0 0.0
        %287 = vmatpush1.msra.mxu0 0.0
        %288 = vmatprep.subr.mxu0 0.0
        %289 = vmatpush1.msra.mxu0 0.0
        %290 = vmatprep.subr.mxu0 0.0
        %291 = vmatpush1.msra.mxu0 0.0
        %292 = vmatprep.subr.mxu0 0.0
        %293 = vmatpush1.msra.mxu0 0.0
        %294 = vmatprep.subr.mxu0 0.0
        %295 = vmatpush1.msra.mxu0 0.0
        %296 = vmatprep.subr.mxu0 0.0
        %297 = vmatpush1.msra.mxu0 0.0
        %298 = vmatprep.subr.mxu0 0.0
        %299 = vmatpush1.msra.mxu0 %v262
        %300 = vmatprep.subr.mxu0 0.0
        %301 = vmatpush1.msra.mxu0 %v261
        %302 = vmatprep.subr.mxu0 0.0
        %303 = vmatpush1.msra.mxu0 %v260
        %304 = vmatprep.subr.mxu0 0.0
        %305 = vmatpush1.msra.mxu0 %v259
        %306 = vmatprep.subr.mxu0 0.0
        %307 = vmatpush2.msra.mxu0 0.0
        %308 = vmatprep.subr.mxu0 0.0
        %309 = vmatpush2.msra.mxu0 0.0
        %310 = vmatprep.subr.mxu0 0.0
        %311 = vmatpush2.msra.mxu0 0.0
        %312 = vmatprep.subr.mxu0 0.0
        %313 = vmatpush2.msra.mxu0 0.0
        %314 = vmatprep.subr.mxu0 0.0
        %315 = vmatpush2.msra.mxu0 0.0
        %316 = vmatprep.subr.mxu0 0.0
        %317 = vmatpush2.msra.mxu0 0.0
        %318 = vmatprep.subr.mxu0 0.0
        %319 = vmatpush2.msra.mxu0 0.0
        %320 = vmatprep.subr.mxu0 0.0
        %321 = vmatpush2.msra.mxu0 0.0
        %322 = vmatprep.subr.mxu0 0.0
        %323 = vmatpush2.msra.mxu0 0.0
        %324 = vmatprep.subr.mxu0 0.0
        %325 = vmatpush2.msra.mxu0 0.0
        %326 = vmatprep.subr.mxu0 0.0
        %327 = vmatpush2.msra.mxu0 0.0
        %328 = vmatprep.subr.mxu0 0.0
        %329 = vmatpush2.msra.mxu0 0.0
        %330 = vmatprep.subr.mxu0 0.0
        %331 = vmatpush2.msra.mxu0 0.0
        %332 = vmatprep.subr.mxu0 0.0
        %333 = vmatpush2.msra.mxu0 0.0
        %334 = vmatprep.subr.mxu0 0.0
        %335 = vmatpush2.msra.mxu0 0.0
        %336 = vmatprep.subr.mxu0 0.0
        %337 = vmatpush2.msra.mxu0 0.0
        %338 = vmatprep.mubr.f32.mxu0 0.0
        %339 = vmatmul.mubr.f32.gmra.mxu0 %v272
        %v340 = vpop.f32.mrf.mxu0
        %v341 = vadd.f32 %v268, %v340
        %v342 = vpop.f32.mrf.mxu0
        %343 = vdwg.mxu0
        %v344 = vld [vmem:[%s3] sm:$0xff]
        %v345 = vld [vmem:[%s3 + $0x8] sm:$0xff]
        %v346 = vld [vmem:[%s3 + $0x10] sm:$0xff]
        %v347 = vld [vmem:[%s3 + $0x18] sm:$0xff]
        %349 = vrot.lane.b32.xlu0 %v341, 96
        %v350 = vpop.permute.xlu0 %349
        %vm351 = vcmask 64512
        %v352 = vsel %vm351, %v341, 0
        %v354 = vsel %vm351, %v350, 0
        %356 = vmatprep.subr.mxu0 0.0
        %357 = vmatpush1.xpose.msra.mxu0 0.0
        %358 = vmatprep.subr.mxu0 0.0
        %359 = vmatpush1.xpose.msra.mxu0 0.0
        %360 = vmatprep.subr.mxu0 0.0
        %361 = vmatpush1.xpose.msra.mxu0 0.0
        %362 = vmatprep.subr.mxu0 0.0
        %363 = vmatpush1.xpose.msra.mxu0 0.0
        %364 = vmatprep.subr.mxu0 0.0
        %365 = vmatpush1.xpose.msra.mxu0 0.0
        %366 = vmatprep.subr.mxu0 0.0
        %367 = vmatpush1.xpose.msra.mxu0 0.0
        %368 = vmatprep.subr.mxu0 0.0
        %369 = vmatpush1.xpose.msra.mxu0 0.0
        %370 = vmatprep.subr.mxu0 0.0
        %371 = vmatpush1.xpose.msra.mxu0 0.0
        %372 = vmatprep.subr.mxu0 0.0
        %373 = vmatpush1.xpose.msra.mxu0 0.0
        %374 = vmatprep.subr.mxu0 0.0
        %375 = vmatpush1.xpose.msra.mxu0 0.0
        %376 = vmatprep.subr.mxu0 0.0
        %377 = vmatpush1.xpose.msra.mxu0 0.0
        %378 = vmatprep.subr.mxu0 0.0
        %379 = vmatpush1.xpose.msra.mxu0 0.0
        %380 = vmatprep.subr.mxu0 0.0
        %381 = vmatpush1.xpose.msra.mxu0 0.0
        %382 = vmatprep.subr.mxu0 0.0
        %383 = vmatpush1.xpose.msra.mxu0 0.0
        %384 = vmatprep.subr.mxu0 0.0
        %385 = vmatpush1.xpose.msra.mxu0 0.0
        %386 = vmatprep.subr.mxu0 0.0
        %387 = vmatpush1.xpose.msra.mxu0 %v354
        %388 = vmatprep.subr.mxu0 0.0
        %389 = vmatpush2.xpose.msra.mxu0 0.0
        %390 = vmatprep.subr.mxu0 0.0
        %391 = vmatpush2.xpose.msra.mxu0 0.0
        %392 = vmatprep.subr.mxu0 0.0
        %393 = vmatpush2.xpose.msra.mxu0 0.0
        %394 = vmatprep.subr.mxu0 0.0
        %395 = vmatpush2.xpose.msra.mxu0 0.0
        %396 = vmatprep.subr.mxu0 0.0
        %397 = vmatpush2.xpose.msra.mxu0 0.0
        %398 = vmatprep.subr.mxu0 0.0
        %399 = vmatpush2.xpose.msra.mxu0 0.0
        %400 = vmatprep.subr.mxu0 0.0
        %401 = vmatpush2.xpose.msra.mxu0 0.0
        %402 = vmatprep.subr.mxu0 0.0
        %403 = vmatpush2.xpose.msra.mxu0 0.0
        %404 = vmatprep.subr.mxu0 0.0
        %405 = vmatpush2.xpose.msra.mxu0 0.0
        %406 = vmatprep.subr.mxu0 0.0
        %407 = vmatpush2.xpose.msra.mxu0 0.0
        %408 = vmatprep.subr.mxu0 0.0
        %409 = vmatpush2.xpose.msra.mxu0 0.0
        %410 = vmatprep.subr.mxu0 0.0
        %411 = vmatpush2.xpose.msra.mxu0 0.0
        %412 = vmatprep.subr.mxu0 0.0
        %413 = vmatpush2.xpose.msra.mxu0 0.0
        %414 = vmatprep.subr.mxu0 0.0
        %415 = vmatpush2.xpose.msra.mxu0 0.0
        %416 = vmatprep.subr.mxu0 0.0
        %417 = vmatpush2.xpose.msra.mxu0 0.0
        %418 = vmatprep.subr.mxu0 0.0
        %419 = vmatpush2.xpose.msra.mxu0 0.0
        %420 = vmatprep.mubr.f32.mxu0 0.0
        %421 = vmatmul.mubr.f32.gmra.mxu0 %v352
        %v422 = vpop.f32.mrf.mxu0
        %v423 = vadd.f32 0.0, %v422
        %v424 = vpop.f32.mrf.mxu0
        %425 = vdwg.mxu0
        %v426 = vmul.f32 %v423, 0.35355338
        %v427 = vsel %vm351, %v426, -inf
        %428 = vmax.xlane.f32.xlu0 %v427
        %v429 = vpop.xlane.xlu0 %428
        %v430 = vsub.f32 %v426, %v429
        %v431 = vmul.f32 %v430, 1.442695
        %v432 = vpow.pop %v431
        %v433 = vsel %vm351, %v432, 0.0
        %434 = vadd.xlane.f32.xlu0 %v433
        %v435 = vpop.xlane.xlu0 %434
        %v436 = vrcp.pop %v435
        %v437 = vmul.f32 %v432, %v436
        %438 = vst.msk [vmem:[%s253] sm:$0xff] %vm351, %v437
        %439 = vrot.lane.b32.xlu0 %v341, 64
        %v440 = vpop.permute.xlu0 %439
        %v443 = vsel %vm351, %v437, 0
        %445 = vmatprep.subr.mxu0 0.0
        %446 = vmatpush1.msra.mxu0 0.0
        %447 = vmatprep.subr.mxu0 0.0
        %448 = vmatpush1.msra.mxu0 0.0
        %449 = vmatprep.subr.mxu0 0.0
        %450 = vmatpush1.msra.mxu0 0.0
        %451 = vmatprep.subr.mxu0 0.0
        %452 = vmatpush1.msra.mxu0 0.0
        %453 = vmatprep.subr.mxu0 0.0
        %454 = vmatpush1.msra.mxu0 0.0
        %455 = vmatprep.subr.mxu0 0.0
        %456 = vmatpush1.msra.mxu0 0.0
        %457 = vmatprep.subr.mxu0 0.0
        %458 = vmatpush1.msra.mxu0 0.0
        %459 = vmatprep.subr.mxu0 0.0
        %460 = vmatpush1.msra.mxu0 0.0
        %461 = vmatprep.subr.mxu0 0.0
        %462 = vmatpush1.msra.mxu0 0.0
        %463 = vmatprep.subr.mxu0 0.0
        %464 = vmatpush1.msra.mxu0 0.0
        %465 = vmatprep.subr.mxu0 0.0
        %466 = vmatpush1.msra.mxu0 0.0
        %467 = vmatprep.subr.mxu0 0.0
        %468 = vmatpush1.msra.mxu0 0.0
        %469 = vmatprep.subr.mxu0 0.0
        %470 = vmatpush1.msra.mxu0 0.0
        %471 = vmatprep.subr.mxu0 0.0
        %472 = vmatpush1.msra.mxu0 0.0
        %473 = vmatprep.subr.mxu0 0.0
        %474 = vmatpush1.msra.mxu0 0.0
        %475 = vmatprep.subr.mxu0 0.0
        %476 = vmatpush1.msra.mxu0 %v440
        %477 = vmatprep.subr.mxu0 0.0
        %478 = vmatpush2.msra.mxu0 0.0
        %479 = vmatprep.subr.mxu0 0.0
        %480 = vmatpush2.msra.mxu0 0.0
        %481 = vmatprep.subr.mxu0 0.0
        %482 = vmatpush2.msra.mxu0 0.0
        %483 = vmatprep.subr.mxu0 0.0
        %484 = vmatpush2.msra.mxu0 0.0
        %485 = vmatprep.subr.mxu0 0.0
        %486 = vmatpush2.msra.mxu0 0.0
        %487 = vmatprep.subr.mxu0 0.0
        %488 = vmatpush2.msra.mxu0 0.0
        %489 = vmatprep.subr.mxu0 0.0
        %490 = vmatpush2.msra.mxu0 0.0
        %491 = vmatprep.subr.mxu0 0.0
        %492 = vmatpush2.msra.mxu0 0.0
        %493 = vmatprep.subr.mxu0 0.0
        %494 = vmatpush2.msra.mxu0 0.0
        %495 = vmatprep.subr.mxu0 0.0
        %496 = vmatpush2.msra.mxu0 0.0
        %497 = vmatprep.subr.mxu0 0.0
        %498 = vmatpush2.msra.mxu0 0.0
        %499 = vmatprep.subr.mxu0 0.0
        %500 = vmatpush2.msra.mxu0 0.0
        %501 = vmatprep.subr.mxu0 0.0
        %502 = vmatpush2.msra.mxu0 0.0
        %503 = vmatprep.subr.mxu0 0.0
        %504 = vmatpush2.msra.mxu0 0.0
        %505 = vmatprep.subr.mxu0 0.0
        %506 = vmatpush2.msra.mxu0 0.0
        %507 = vmatprep.subr.mxu0 0.0
        %508 = vmatpush2.msra.mxu0 0.0
        %509 = vmatprep.mubr.f32.mxu0 0.0
        %510 = vmatmul.mubr.f32.gmra.mxu0 %v443
        %v511 = vpop.f32.mrf.mxu0
        %v512 = vadd.f32 0.0, %v511
        %v513 = vpop.f32.mrf.mxu0
        %514 = vdwg.mxu0
        %515 = vrot.lane.b32.xlu0 %v341, 120
        %v516 = vpop.permute.xlu0 %515
        %517 = vrot.lane.b32.xlu0 %v341, 88
        %v518 = vpop.permute.xlu0 %517
        %v519 = vsel %vm351, %v516, 0
        %v521 = vsel %vm351, %v518, 0
        %523 = vmatprep.subr.mxu0 0.0
        %524 = vmatpush1.xpose.msra.mxu0 0.0
        %525 = vmatprep.subr.mxu0 0.0
        %526 = vmatpush1.xpose.msra.mxu0 0.0
        %527 = vmatprep.subr.mxu0 0.0
        %528 = vmatpush1.xpose.msra.mxu0 0.0
        %529 = vmatprep.subr.mxu0 0.0
        %530 = vmatpush1.xpose.msra.mxu0 0.0
        %531 = vmatprep.subr.mxu0 0.0
        %532 = vmatpush1.xpose.msra.mxu0 0.0
        %533 = vmatprep.subr.mxu0 0.0
        %534 = vmatpush1.xpose.msra.mxu0 0.0
        %535 = vmatprep.subr.mxu0 0.0
        %536 = vmatpush1.xpose.msra.mxu0 0.0
        %537 = vmatprep.subr.mxu0 0.0
        %538 = vmatpush1.xpose.msra.mxu0 0.0
        %539 = vmatprep.subr.mxu0 0.0
        %540 = vmatpush1.xpose.msra.mxu0 0.0
        %541 = vmatprep.subr.mxu0 0.0
        %542 = vmatpush1.xpose.msra.mxu0 0.0
        %543 = vmatprep.subr.mxu0 0.0
        %544 = vmatpush1.xpose.msra.mxu0 0.0
        %545 = vmatprep.subr.mxu0 0.0
        %546 = vmatpush1.xpose.msra.mxu0 0.0
        %547 = vmatprep.subr.mxu0 0.0
        %548 = vmatpush1.xpose.msra.mxu0 0.0
        %549 = vmatprep.subr.mxu0 0.0
        %550 = vmatpush1.xpose.msra.mxu0 0.0
        %551 = vmatprep.subr.mxu0 0.0
        %552 = vmatpush1.xpose.msra.mxu0 0.0
        %553 = vmatprep.subr.mxu0 0.0
        %554 = vmatpush1.xpose.msra.mxu0 %v521
        %555 = vmatprep.subr.mxu0 0.0
        %556 = vmatpush2.xpose.msra.mxu0 0.0
        %557 = vmatprep.subr.mxu0 0.0
        %558 = vmatpush2.xpose.msra.mxu0 0.0
        %559 = vmatprep.subr.mxu0 0.0
        %560 = vmatpush2.xpose.msra.mxu0 0.0
        %561 = vmatprep.subr.mxu0 0.0
        %562 = vmatpush2.xpose.msra.mxu0 0.0
        %563 = vmatprep.subr.mxu0 0.0
        %564 = vmatpush2.xpose.msra.mxu0 0.0
        %565 = vmatprep.subr.mxu0 0.0
        %566 = vmatpush2.xpose.msra.mxu0 0.0
        %567 = vmatprep.subr.mxu0 0.0
        %568 = vmatpush2.xpose.msra.mxu0 0.0
        %569 = vmatprep.subr.mxu0 0.0
        %570 = vmatpush2.xpose.msra.mxu0 0.0
        %571 = vmatprep.subr.mxu0 0.0
        %572 = vmatpush2.xpose.msra.mxu0 0.0
        %573 = vmatprep.subr.mxu0 0.0
        %574 = vmatpush2.xpose.msra.mxu0 0.0
        %575 = vmatprep.subr.mxu0 0.0
        %576 = vmatpush2.xpose.msra.mxu0 0.0
        %577 = vmatprep.subr.mxu0 0.0
        %578 = vmatpush2.xpose.msra.mxu0 0.0
        %579 = vmatprep.subr.mxu0 0.0
        %580 = vmatpush2.xpose.msra.mxu0 0.0
        %581 = vmatprep.subr.mxu0 0.0
        %582 = vmatpush2.xpose.msra.mxu0 0.0
        %583 = vmatprep.subr.mxu0 0.0
        %584 = vmatpush2.xpose.msra.mxu0 0.0
        %585 = vmatprep.subr.mxu0 0.0
        %586 = vmatpush2.xpose.msra.mxu0 0.0
        %587 = vmatprep.mubr.f32.mxu0 0.0
        %588 = vmatmul.mubr.f32.gmra.mxu0 %v519
        %v589 = vpop.f32.mrf.mxu0
        %v590 = vadd.f32 0.0, %v589
        %v591 = vpop.f32.mrf.mxu0
        %592 = vdwg.mxu0
        %v593 = vmul.f32 %v590, 0.35355338
        %v594 = vsel %vm351, %v593, -inf
        %595 = vmax.xlane.f32.xlu0 %v594
        %v596 = vpop.xlane.xlu0 %595
        %v597 = vsub.f32 %v593, %v596
        %v598 = vmul.f32 %v597, 1.442695
        %v599 = vpow.pop %v598
        %v600 = vsel %vm351, %v599, 0.0
        %601 = vadd.xlane.f32.xlu0 %v600
        %v602 = vpop.xlane.xlu0 %601
        %v603 = vrcp.pop %v602
        %v604 = vmul.f32 %v599, %v603
        %s605 = scalar_lea.vmem %s253, 8 [#allocation4]
        %606 = vst.msk [vmem:[%s605] sm:$0xff] %vm351, %v604
        %607 = vrot.lane.b32.xlu0 %v341, 56
        %v608 = vpop.permute.xlu0 %607
        %v611 = vsel %vm351, %v604, 0
        %613 = vmatprep.subr.mxu0 0.0
        %614 = vmatpush1.msra.mxu0 0.0
        %615 = vmatprep.subr.mxu0 0.0
        %616 = vmatpush1.msra.mxu0 0.0
        %617 = vmatprep.subr.mxu0 0.0
        %618 = vmatpush1.msra.mxu0 0.0
        %619 = vmatprep.subr.mxu0 0.0
        %620 = vmatpush1.msra.mxu0 0.0
        %621 = vmatprep.subr.mxu0 0.0
        %622 = vmatpush1.msra.mxu0 0.0
        %623 = vmatprep.subr.mxu0 0.0
        %624 = vmatpush1.msra.mxu0 0.0
        %625 = vmatprep.subr.mxu0 0.0
        %626 = vmatpush1.msra.mxu0 0.0
        %627 = vmatprep.subr.mxu0 0.0
        %628 = vmatpush1.msra.mxu0 0.0
        %629 = vmatprep.subr.mxu0 0.0
        %630 = vmatpush1.msra.mxu0 0.0
        %631 = vmatprep.subr.mxu0 0.0
        %632 = vmatpush1.msra.mxu0 0.0
        %633 = vmatprep.subr.mxu0 0.0
        %634 = vmatpush1.msra.mxu0 0.0
        %635 = vmatprep.subr.mxu0 0.0
        %636 = vmatpush1.msra.mxu0 0.0
        %637 = vmatprep.subr.mxu0 0.0
        %638 = vmatpush1.msra.mxu0 0.0
        %639 = vmatprep.subr.mxu0 0.0
        %640 = vmatpush1.msra.mxu0 0.0
        %641 = vmatprep.subr.mxu0 0.0
        %642 = vmatpush1.msra.mxu0 0.0
        %643 = vmatprep.subr.mxu0 0.0
        %644 = vmatpush1.msra.mxu0 %v608
        %645 = vmatprep.subr.mxu0 0.0
        %646 = vmatpush2.msra.mxu0 0.0
        %647 = vmatprep.subr.mxu0 0.0
        %648 = vmatpush2.msra.mxu0 0.0
        %649 = vmatprep.subr.mxu0 0.0
        %650 = vmatpush2.msra.mxu0 0.0
        %651 = vmatprep.subr.mxu0 0.0
        %652 = vmatpush2.msra.mxu0 0.0
        %653 = vmatprep.subr.mxu0 0.0
        %654 = vmatpush2.msra.mxu0 0.0
        %655 = vmatprep.subr.mxu0 0.0
        %656 = vmatpush2.msra.mxu0 0.0
        %657 = vmatprep.subr.mxu0 0.0
        %658 = vmatpush2.msra.mxu0 0.0
        %659 = vmatprep.subr.mxu0 0.0
        %660 = vmatpush2.msra.mxu0 0.0
        %661 = vmatprep.subr.mxu0 0.0
        %662 = vmatpush2.msra.mxu0 0.0
        %663 = vmatprep.subr.mxu0 0.0
        %664 = vmatpush2.msra.mxu0 0.0
        %665 = vmatprep.subr.mxu0 0.0
        %666 = vmatpush2.msra.mxu0 0.0
        %667 = vmatprep.subr.mxu0 0.0
        %668 = vmatpush2.msra.mxu0 0.0
        %669 = vmatprep.subr.mxu0 0.0
        %670 = vmatpush2.msra.mxu0 0.0
        %671 = vmatprep.subr.mxu0 0.0
        %672 = vmatpush2.msra.mxu0 0.0
        %673 = vmatprep.subr.mxu0 0.0
        %674 = vmatpush2.msra.mxu0 0.0
        %675 = vmatprep.subr.mxu0 0.0
        %676 = vmatpush2.msra.mxu0 0.0
        %677 = vmatprep.mubr.f32.mxu0 0.0
        %678 = vmatmul.mubr.f32.gmra.mxu0 %v611
        %v679 = vpop.f32.mrf.mxu0
        %v680 = vadd.f32 0.0, %v679
        %v681 = vpop.f32.mrf.mxu0
        %682 = vdwg.mxu0
        %v684 = vsel %vm351, %v680, 0
        %686 = vmatprep.subr.mxu0 0.0
        %687 = vmatpush1.msra.mxu0 0.0
        %688 = vmatprep.subr.mxu0 0.0
        %689 = vmatpush1.msra.mxu0 0.0
        %690 = vmatprep.subr.mxu0 0.0
        %691 = vmatpush1.msra.mxu0 0.0
        %692 = vmatprep.subr.mxu0 0.0
        %693 = vmatpush1.msra.mxu0 0.0
        %694 = vmatprep.subr.mxu0 0.0
        %695 = vmatpush1.msra.mxu0 0.0
        %696 = vmatprep.subr.mxu0 0.0
        %697 = vmatpush1.msra.mxu0 0.0
        %698 = vmatprep.subr.mxu0 0.0
        %699 = vmatpush1.msra.mxu0 0.0
        %700 = vmatprep.subr.mxu0 0.0
        %701 = vmatpush1.msra.mxu0 0.0
        %702 = vmatprep.subr.mxu0 0.0
        %703 = vmatpush1.msra.mxu0 0.0
        %704 = vmatprep.subr.mxu0 0.0
        %705 = vmatpush1.msra.mxu0 0.0
        %706 = vmatprep.subr.mxu0 0.0
        %707 = vmatpush1.msra.mxu0 0.0
        %708 = vmatprep.subr.mxu0 0.0
        %709 = vmatpush1.msra.mxu0 0.0
        %710 = vmatprep.subr.mxu0 0.0
        %711 = vmatpush1.msra.mxu0 0.0
        %712 = vmatprep.subr.mxu0 0.0
        %713 = vmatpush1.msra.mxu0 0.0
        %714 = vmatprep.subr.mxu0 0.0
        %715 = vmatpush1.msra.mxu0 0.0
        %716 = vmatprep.subr.mxu0 0.0
        %717 = vmatpush1.msra.mxu0 %v345
        %718 = vmatprep.subr.mxu0 0.0
        %719 = vmatpush2.msra.mxu0 0.0
        %720 = vmatprep.subr.mxu0 0.0
        %721 = vmatpush2.msra.mxu0 0.0
        %722 = vmatprep.subr.mxu0 0.0
        %723 = vmatpush2.msra.mxu0 0.0
        %724 = vmatprep.subr.mxu0 0.0
        %725 = vmatpush2.msra.mxu0 0.0
        %726 = vmatprep.subr.mxu0 0.0
        %727 = vmatpush2.msra.mxu0 0.0
        %728 = vmatprep.subr.mxu0 0.0
        %729 = vmatpush2.msra.mxu0 0.0
        %730 = vmatprep.subr.mxu0 0.0
        %731 = vmatpush2.msra.mxu0 0.0
        %732 = vmatprep.subr.mxu0 0.0
        %733 = vmatpush2.msra.mxu0 0.0
        %734 = vmatprep.subr.mxu0 0.0
        %735 = vmatpush2.msra.mxu0 0.0
        %736 = vmatprep.subr.mxu0 0.0
        %737 = vmatpush2.msra.mxu0 0.0
        %738 = vmatprep.subr.mxu0 0.0
        %739 = vmatpush2.msra.mxu0 0.0
        %740 = vmatprep.subr.mxu0 0.0
        %741 = vmatpush2.msra.mxu0 0.0
        %742 = vmatprep.subr.mxu0 0.0
        %743 = vmatpush2.msra.mxu0 0.0
        %744 = vmatprep.subr.mxu0 0.0
        %745 = vmatpush2.msra.mxu0 0.0
        %746 = vmatprep.subr.mxu0 0.0
        %747 = vmatpush2.msra.mxu0 0.0
        %748 = vmatprep.subr.mxu0 0.0
        %749 = vmatpush2.msra.mxu0 0.0
        %750 = vmatprep.mubr.f32.mxu0 0.0
        %751 = vmatmul.mubr.f32.gmra.mxu0 %v684
        %v752 = vpop.f32.mrf.mxu0
        %v753 = vadd.f32 0.0, %v752
        %v754 = vpop.f32.mrf.mxu0
        %755 = vdwg.mxu0
        %v757 = vsel %vm351, %v512, 0
        %759 = vmatprep.subr.mxu0 0.0
        %760 = vmatpush1.msra.mxu0 0.0
        %761 = vmatprep.subr.mxu0 0.0
        %762 = vmatpush1.msra.mxu0 0.0
        %763 = vmatprep.subr.mxu0 0.0
        %764 = vmatpush1.msra.mxu0 0.0
        %765 = vmatprep.subr.mxu0 0.0
        %766 = vmatpush1.msra.mxu0 0.0
        %767 = vmatprep.subr.mxu0 0.0
        %768 = vmatpush1.msra.mxu0 0.0
        %769 = vmatprep.subr.mxu0 0.0
        %770 = vmatpush1.msra.mxu0 0.0
        %771 = vmatprep.subr.mxu0 0.0
        %772 = vmatpush1.msra.mxu0 0.0
        %773 = vmatprep.subr.mxu0 0.0
        %774 = vmatpush1.msra.mxu0 0.0
        %775 = vmatprep.subr.mxu0 0.0
        %776 = vmatpush1.msra.mxu0 0.0
        %777 = vmatprep.subr.mxu0 0.0
        %778 = vmatpush1.msra.mxu0 0.0
        %779 = vmatprep.subr.mxu0 0.0
        %780 = vmatpush1.msra.mxu0 0.0
        %781 = vmatprep.subr.mxu0 0.0
        %782 = vmatpush1.msra.mxu0 0.0
        %783 = vmatprep.subr.mxu0 0.0
        %784 = vmatpush1.msra.mxu0 0.0
        %785 = vmatprep.subr.mxu0 0.0
        %786 = vmatpush1.msra.mxu0 0.0
        %787 = vmatprep.subr.mxu0 0.0
        %788 = vmatpush1.msra.mxu0 0.0
        %789 = vmatprep.subr.mxu0 0.0
        %790 = vmatpush1.msra.mxu0 %v344
        %791 = vmatprep.subr.mxu0 0.0
        %792 = vmatpush2.msra.mxu0 0.0
        %793 = vmatprep.subr.mxu0 0.0
        %794 = vmatpush2.msra.mxu0 0.0
        %795 = vmatprep.subr.mxu0 0.0
        %796 = vmatpush2.msra.mxu0 0.0
        %797 = vmatprep.subr.mxu0 0.0
        %798 = vmatpush2.msra.mxu0 0.0
        %799 = vmatprep.subr.mxu0 0.0
        %800 = vmatpush2.msra.mxu0 0.0
        %801 = vmatprep.subr.mxu0 0.0
        %802 = vmatpush2.msra.mxu0 0.0
        %803 = vmatprep.subr.mxu0 0.0
        %804 = vmatpush2.msra.mxu0 0.0
        %805 = vmatprep.subr.mxu0 0.0
        %806 = vmatpush2.msra.mxu0 0.0
        %807 = vmatprep.subr.mxu0 0.0
        %808 = vmatpush2.msra.mxu0 0.0
        %809 = vmatprep.subr.mxu0 0.0
        %810 = vmatpush2.msra.mxu0 0.0
        %811 = vmatprep.subr.mxu0 0.0
        %812 = vmatpush2.msra.mxu0 0.0
        %813 = vmatprep.subr.mxu0 0.0
        %814 = vmatpush2.msra.mxu0 0.0
        %815 = vmatprep.subr.mxu0 0.0
        %816 = vmatpush2.msra.mxu0 0.0
        %817 = vmatprep.subr.mxu0 0.0
        %818 = vmatpush2.msra.mxu0 0.0
        %819 = vmatprep.subr.mxu0 0.0
        %820 = vmatpush2.msra.mxu0 0.0
        %821 = vmatprep.subr.mxu0 0.0
        %822 = vmatpush2.msra.mxu0 0.0
        %823 = vmatprep.mubr.f32.mxu0 0.0
        %824 = vmatmul.mubr.f32.gmra.mxu0 %v757
        %v825 = vpop.f32.mrf.mxu0
        %v826 = vadd.f32 %v753, %v825
        %v827 = vpop.f32.mrf.mxu0
        %828 = vdwg.mxu0
        %829 = vrot.lane.b32.xlu0 %v341, 112
        %v830 = vpop.permute.xlu0 %829
        %831 = vrot.lane.b32.xlu0 %v341, 80
        %v832 = vpop.permute.xlu0 %831
        %v833 = vsel %vm351, %v830, 0
        %v835 = vsel %vm351, %v832, 0
        %837 = vmatprep.subr.mxu0 0.0
        %838 = vmatpush1.xpose.msra.mxu0 0.0
        %839 = vmatprep.subr.mxu0 0.0
        %840 = vmatpush1.xpose.msra.mxu0 0.0
        %841 = vmatprep.subr.mxu0 0.0
        %842 = vmatpush1.xpose.msra.mxu0 0.0
        %843 = vmatprep.subr.mxu0 0.0
        %844 = vmatpush1.xpose.msra.mxu0 0.0
        %845 = vmatprep.subr.mxu0 0.0
        %846 = vmatpush1.xpose.msra.mxu0 0.0
        %847 = vmatprep.subr.mxu0 0.0
        %848 = vmatpush1.xpose.msra.mxu0 0.0
        %849 = vmatprep.subr.mxu0 0.0
        %850 = vmatpush1.xpose.msra.mxu0 0.0
        %851 = vmatprep.subr.mxu0 0.0
        %852 = vmatpush1.xpose.msra.mxu0 0.0
        %853 = vmatprep.subr.mxu0 0.0
        %854 = vmatpush1.xpose.msra.mxu0 0.0
        %855 = vmatprep.subr.mxu0 0.0
        %856 = vmatpush1.xpose.msra.mxu0 0.0
        %857 = vmatprep.subr.mxu0 0.0
        %858 = vmatpush1.xpose.msra.mxu0 0.0
        %859 = vmatprep.subr.mxu0 0.0
        %860 = vmatpush1.xpose.msra.mxu0 0.0
        %861 = vmatprep.subr.mxu0 0.0
        %862 = vmatpush1.xpose.msra.mxu0 0.0
        %863 = vmatprep.subr.mxu0 0.0
        %864 = vmatpush1.xpose.msra.mxu0 0.0
        %865 = vmatprep.subr.mxu0 0.0
        %866 = vmatpush1.xpose.msra.mxu0 0.0
        %867 = vmatprep.subr.mxu0 0.0
        %868 = vmatpush1.xpose.msra.mxu0 %v835
        %869 = vmatprep.subr.mxu0 0.0
        %870 = vmatpush2.xpose.msra.mxu0 0.0
        %871 = vmatprep.subr.mxu0 0.0
        %872 = vmatpush2.xpose.msra.mxu0 0.0
        %873 = vmatprep.subr.mxu0 0.0
        %874 = vmatpush2.xpose.msra.mxu0 0.0
        %875 = vmatprep.subr.mxu0 0.0
        %876 = vmatpush2.xpose.msra.mxu0 0.0
        %877 = vmatprep.subr.mxu0 0.0
        %878 = vmatpush2.xpose.msra.mxu0 0.0
        %879 = vmatprep.subr.mxu0 0.0
        %880 = vmatpush2.xpose.msra.mxu0 0.0
        %881 = vmatprep.subr.mxu0 0.0
        %882 = vmatpush2.xpose.msra.mxu0 0.0
        %883 = vmatprep.subr.mxu0 0.0
        %884 = vmatpush2.xpose.msra.mxu0 0.0
        %885 = vmatprep.subr.mxu0 0.0
        %886 = vmatpush2.xpose.msra.mxu0 0.0
        %887 = vmatprep.subr.mxu0 0.0
        %888 = vmatpush2.xpose.msra.mxu0 0.0
        %889 = vmatprep.subr.mxu0 0.0
        %890 = vmatpush2.xpose.msra.mxu0 0.0
        %891 = vmatprep.subr.mxu0 0.0
        %892 = vmatpush2.xpose.msra.mxu0 0.0
        %893 = vmatprep.subr.mxu0 0.0
        %894 = vmatpush2.xpose.msra.mxu0 0.0
        %895 = vmatprep.subr.mxu0 0.0
        %896 = vmatpush2.xpose.msra.mxu0 0.0
        %897 = vmatprep.subr.mxu0 0.0
        %898 = vmatpush2.xpose.msra.mxu0 0.0
        %899 = vmatprep.subr.mxu0 0.0
        %900 = vmatpush2.xpose.msra.mxu0 0.0
        %901 = vmatprep.mubr.f32.mxu0 0.0
        %902 = vmatmul.mubr.f32.gmra.mxu0 %v833
        %v903 = vpop.f32.mrf.mxu0
        %v904 = vadd.f32 0.0, %v903
        %v905 = vpop.f32.mrf.mxu0
        %906 = vdwg.mxu0
        %v907 = vmul.f32 %v904, 0.35355338
        %v908 = vsel %vm351, %v907, -inf
        %909 = vmax.xlane.f32.xlu0 %v908
        %v910 = vpop.xlane.xlu0 %909
        %v911 = vsub.f32 %v907, %v910
        %v912 = vmul.f32 %v911, 1.442695
        %v913 = vpow.pop %v912
        %v914 = vsel %vm351, %v913, 0.0
        %915 = vadd.xlane.f32.xlu0 %v914
        %v916 = vpop.xlane.xlu0 %915
        %v917 = vrcp.pop %v916
        %v918 = vmul.f32 %v913, %v917
        %s919 = scalar_lea.vmem %s253, 16 [#allocation4]
        %920 = vst.msk [vmem:[%s919] sm:$0xff] %vm351, %v918
        %921 = vrot.lane.b32.xlu0 %v341, 48
        %v922 = vpop.permute.xlu0 %921
        %v925 = vsel %vm351, %v918, 0
        %927 = vmatprep.subr.mxu0 0.0
        %928 = vmatpush1.msra.mxu0 0.0
        %929 = vmatprep.subr.mxu0 0.0
        %930 = vmatpush1.msra.mxu0 0.0
        %931 = vmatprep.subr.mxu0 0.0
        %932 = vmatpush1.msra.mxu0 0.0
        %933 = vmatprep.subr.mxu0 0.0
        %934 = vmatpush1.msra.mxu0 0.0
        %935 = vmatprep.subr.mxu0 0.0
        %936 = vmatpush1.msra.mxu0 0.0
        %937 = vmatprep.subr.mxu0 0.0
        %938 = vmatpush1.msra.mxu0 0.0
        %939 = vmatprep.subr.mxu0 0.0
        %940 = vmatpush1.msra.mxu0 0.0
        %941 = vmatprep.subr.mxu0 0.0
        %942 = vmatpush1.msra.mxu0 0.0
        %943 = vmatprep.subr.mxu0 0.0
        %944 = vmatpush1.msra.mxu0 0.0
        %945 = vmatprep.subr.mxu0 0.0
        %946 = vmatpush1.msra.mxu0 0.0
        %947 = vmatprep.subr.mxu0 0.0
        %948 = vmatpush1.msra.mxu0 0.0
        %949 = vmatprep.subr.mxu0 0.0
        %950 = vmatpush1.msra.mxu0 0.0
        %951 = vmatprep.subr.mxu0 0.0
        %952 = vmatpush1.msra.mxu0 0.0
        %953 = vmatprep.subr.mxu0 0.0
        %954 = vmatpush1.msra.mxu0 0.0
        %955 = vmatprep.subr.mxu0 0.0
        %956 = vmatpush1.msra.mxu0 0.0
        %957 = vmatprep.subr.mxu0 0.0
        %958 = vmatpush1.msra.mxu0 %v922
        %959 = vmatprep.subr.mxu0 0.0
        %960 = vmatpush2.msra.mxu0 0.0
        %961 = vmatprep.subr.mxu0 0.0
        %962 = vmatpush2.msra.mxu0 0.0
        %963 = vmatprep.subr.mxu0 0.0
        %964 = vmatpush2.msra.mxu0 0.0
        %965 = vmatprep.subr.mxu0 0.0
        %966 = vmatpush2.msra.mxu0 0.0
        %967 = vmatprep.subr.mxu0 0.0
        %968 = vmatpush2.msra.mxu0 0.0
        %969 = vmatprep.subr.mxu0 0.0
        %970 = vmatpush2.msra.mxu0 0.0
        %971 = vmatprep.subr.mxu0 0.0
        %972 = vmatpush2.msra.mxu0 0.0
        %973 = vmatprep.subr.mxu0 0.0
        %974 = vmatpush2.msra.mxu0 0.0
        %975 = vmatprep.subr.mxu0 0.0
        %976 = vmatpush2.msra.mxu0 0.0
        %977 = vmatprep.subr.mxu0 0.0
        %978 = vmatpush2.msra.mxu0 0.0
        %979 = vmatprep.subr.mxu0 0.0
        %980 = vmatpush2.msra.mxu0 0.0
        %981 = vmatprep.subr.mxu0 0.0
        %982 = vmatpush2.msra.mxu0 0.0
        %983 = vmatprep.subr.mxu0 0.0
        %984 = vmatpush2.msra.mxu0 0.0
        %985 = vmatprep.subr.mxu0 0.0
        %986 = vmatpush2.msra.mxu0 0.0
        %987 = vmatprep.subr.mxu0 0.0
        %988 = vmatpush2.msra.mxu0 0.0
        %989 = vmatprep.subr.mxu0 0.0
        %990 = vmatpush2.msra.mxu0 0.0
        %991 = vmatprep.mubr.f32.mxu0 0.0
        %992 = vmatmul.mubr.f32.gmra.mxu0 %v925
        %v993 = vpop.f32.mrf.mxu0
        %v994 = vadd.f32 0.0, %v993
        %v995 = vpop.f32.mrf.mxu0
        %996 = vdwg.mxu0
        %v998 = vsel %vm351, %v994, 0
        %1000 = vmatprep.subr.mxu0 0.0
        %1001 = vmatpush1.msra.mxu0 0.0
        %1002 = vmatprep.subr.mxu0 0.0
        %1003 = vmatpush1.msra.mxu0 0.0
        %1004 = vmatprep.subr.mxu0 0.0
        %1005 = vmatpush1.msra.mxu0 0.0
        %1006 = vmatprep.subr.mxu0 0.0
        %1007 = vmatpush1.msra.mxu0 0.0
        %1008 = vmatprep.subr.mxu0 0.0
        %1009 = vmatpush1.msra.mxu0 0.0
        %1010 = vmatprep.subr.mxu0 0.0
        %1011 = vmatpush1.msra.mxu0 0.0
        %1012 = vmatprep.subr.mxu0 0.0
        %1013 = vmatpush1.msra.mxu0 0.0
        %1014 = vmatprep.subr.mxu0 0.0
        %1015 = vmatpush1.msra.mxu0 0.0
        %1016 = vmatprep.subr.mxu0 0.0
        %1017 = vmatpush1.msra.mxu0 0.0
        %1018 = vmatprep.subr.mxu0 0.0
        %1019 = vmatpush1.msra.mxu0 0.0
        %1020 = vmatprep.subr.mxu0 0.0
        %1021 = vmatpush1.msra.mxu0 0.0
        %1022 = vmatprep.subr.mxu0 0.0
        %1023 = vmatpush1.msra.mxu0 0.0
        %1024 = vmatprep.subr.mxu0 0.0
        %1025 = vmatpush1.msra.mxu0 0.0
        %1026 = vmatprep.subr.mxu0 0.0
        %1027 = vmatpush1.msra.mxu0 0.0
        %1028 = vmatprep.subr.mxu0 0.0
        %1029 = vmatpush1.msra.mxu0 0.0
        %1030 = vmatprep.subr.mxu0 0.0
        %1031 = vmatpush1.msra.mxu0 %v346
        %1032 = vmatprep.subr.mxu0 0.0
        %1033 = vmatpush2.msra.mxu0 0.0
        %1034 = vmatprep.subr.mxu0 0.0
        %1035 = vmatpush2.msra.mxu0 0.0
        %1036 = vmatprep.subr.mxu0 0.0
        %1037 = vmatpush2.msra.mxu0 0.0
        %1038 = vmatprep.subr.mxu0 0.0
        %1039 = vmatpush2.msra.mxu0 0.0
        %1040 = vmatprep.subr.mxu0 0.0
        %1041 = vmatpush2.msra.mxu0 0.0
        %1042 = vmatprep.subr.mxu0 0.0
        %1043 = vmatpush2.msra.mxu0 0.0
        %1044 = vmatprep.subr.mxu0 0.0
        %1045 = vmatpush2.msra.mxu0 0.0
        %1046 = vmatprep.subr.mxu0 0.0
        %1047 = vmatpush2.msra.mxu0 0.0
        %1048 = vmatprep.subr.mxu0 0.0
        %1049 = vmatpush2.msra.mxu0 0.0
        %1050 = vmatprep.subr.mxu0 0.0
        %1051 = vmatpush2.msra.mxu0 0.0
        %1052 = vmatprep.subr.mxu0 0.0
        %1053 = vmatpush2.msra.mxu0 0.0
        %1054 = vmatprep.subr.mxu0 0.0
        %1055 = vmatpush2.msra.mxu0 0.0
        %1056 = vmatprep.subr.mxu0 0.0
        %1057 = vmatpush2.msra.mxu0 0.0
        %1058 = vmatprep.subr.mxu0 0.0
        %1059 = vmatpush2.msra.mxu0 0.0
        %1060 = vmatprep.subr.mxu0 0.0
        %1061 = vmatpush2.msra.mxu0 0.0
        %1062 = vmatprep.subr.mxu0 0.0
        %1063 = vmatpush2.msra.mxu0 0.0
        %1064 = vmatprep.mubr.f32.mxu0 0.0
        %1065 = vmatmul.mubr.f32.gmra.mxu0 %v998
        %v1066 = vpop.f32.mrf.mxu0
        %v1067 = vadd.f32 0.0, %v1066
        %v1068 = vpop.f32.mrf.mxu0
        %1069 = vdwg.mxu0
        %v1070 = vadd.f32 %v826, %v1067
        %1071 = vrot.lane.b32.xlu0 %v341, 104
        %v1072 = vpop.permute.xlu0 %1071
        %1073 = vrot.lane.b32.xlu0 %v341, 72
        %v1074 = vpop.permute.xlu0 %1073
        %v1075 = vsel %vm351, %v1072, 0
        %v1077 = vsel %vm351, %v1074, 0
        %1079 = vmatprep.subr.mxu0 0.0
        %1080 = vmatpush1.xpose.msra.mxu0 0.0
        %1081 = vmatprep.subr.mxu0 0.0
        %1082 = vmatpush1.xpose.msra.mxu0 0.0
        %1083 = vmatprep.subr.mxu0 0.0
        %1084 = vmatpush1.xpose.msra.mxu0 0.0
        %1085 = vmatprep.subr.mxu0 0.0
        %1086 = vmatpush1.xpose.msra.mxu0 0.0
        %1087 = vmatprep.subr.mxu0 0.0
        %1088 = vmatpush1.xpose.msra.mxu0 0.0
        %1089 = vmatprep.subr.mxu0 0.0
        %1090 = vmatpush1.xpose.msra.mxu0 0.0
        %1091 = vmatprep.subr.mxu0 0.0
        %1092 = vmatpush1.xpose.msra.mxu0 0.0
        %1093 = vmatprep.subr.mxu0 0.0
        %1094 = vmatpush1.xpose.msra.mxu0 0.0
        %1095 = vmatprep.subr.mxu0 0.0
        %1096 = vmatpush1.xpose.msra.mxu0 0.0
        %1097 = vmatprep.subr.mxu0 0.0
        %1098 = vmatpush1.xpose.msra.mxu0 0.0
        %1099 = vmatprep.subr.mxu0 0.0
        %1100 = vmatpush1.xpose.msra.mxu0 0.0
        %1101 = vmatprep.subr.mxu0 0.0
        %1102 = vmatpush1.xpose.msra.mxu0 0.0
        %1103 = vmatprep.subr.mxu0 0.0
        %1104 = vmatpush1.xpose.msra.mxu0 0.0
        %1105 = vmatprep.subr.mxu0 0.0
        %1106 = vmatpush1.xpose.msra.mxu0 0.0
        %1107 = vmatprep.subr.mxu0 0.0
        %1108 = vmatpush1.xpose.msra.mxu0 0.0
        %1109 = vmatprep.subr.mxu0 0.0
        %1110 = vmatpush1.xpose.msra.mxu0 %v1077
        %1111 = vmatprep.subr.mxu0 0.0
        %1112 = vmatpush2.xpose.msra.mxu0 0.0
        %1113 = vmatprep.subr.mxu0 0.0
        %1114 = vmatpush2.xpose.msra.mxu0 0.0
        %1115 = vmatprep.subr.mxu0 0.0
        %1116 = vmatpush2.xpose.msra.mxu0 0.0
        %1117 = vmatprep.subr.mxu0 0.0
        %1118 = vmatpush2.xpose.msra.mxu0 0.0
        %1119 = vmatprep.subr.mxu0 0.0
        %1120 = vmatpush2.xpose.msra.mxu0 0.0
        %1121 = vmatprep.subr.mxu0 0.0
        %1122 = vmatpush2.xpose.msra.mxu0 0.0
        %1123 = vmatprep.subr.mxu0 0.0
        %1124 = vmatpush2.xpose.msra.mxu0 0.0
        %1125 = vmatprep.subr.mxu0 0.0
        %1126 = vmatpush2.xpose.msra.mxu0 0.0
        %1127 = vmatprep.subr.mxu0 0.0
        %1128 = vmatpush2.xpose.msra.mxu0 0.0
        %1129 = vmatprep.subr.mxu0 0.0
        %1130 = vmatpush2.xpose.msra.mxu0 0.0
        %1131 = vmatprep.subr.mxu0 0.0
        %1132 = vmatpush2.xpose.msra.mxu0 0.0
        %1133 = vmatprep.subr.mxu0 0.0
        %1134 = vmatpush2.xpose.msra.mxu0 0.0
        %1135 = vmatprep.subr.mxu0 0.0
        %1136 = vmatpush2.xpose.msra.mxu0 0.0
        %1137 = vmatprep.subr.mxu0 0.0
        %1138 = vmatpush2.xpose.msra.mxu0 0.0
        %1139 = vmatprep.subr.mxu0 0.0
        %1140 = vmatpush2.xpose.msra.mxu0 0.0
        %1141 = vmatprep.subr.mxu0 0.0
        %1142 = vmatpush2.xpose.msra.mxu0 0.0
        %1143 = vmatprep.mubr.f32.mxu0 0.0
        %1144 = vmatmul.mubr.f32.gmra.mxu0 %v1075
        %v1145 = vpop.f32.mrf.mxu0
        %v1146 = vadd.f32 0.0, %v1145
        %v1147 = vpop.f32.mrf.mxu0
        %1148 = vdwg.mxu0
        %v1149 = vmul.f32 %v1146, 0.35355338
        %v1150 = vsel %vm351, %v1149, -inf
        %1151 = vmax.xlane.f32.xlu0 %v1150
        %v1152 = vpop.xlane.xlu0 %1151
        %v1153 = vsub.f32 %v1149, %v1152
        %v1154 = vmul.f32 %v1153, 1.442695
        %v1155 = vpow.pop %v1154
        %v1156 = vsel %vm351, %v1155, 0.0
        %1157 = vadd.xlane.f32.xlu0 %v1156
        %v1158 = vpop.xlane.xlu0 %1157
        %v1159 = vrcp.pop %v1158
        %v1160 = vmul.f32 %v1155, %v1159
        %s1161 = scalar_lea.vmem %s253, 24 [#allocation4]
        %1162 = vst.msk [vmem:[%s1161] sm:$0xff] %vm351, %v1160
        %1163 = vrot.lane.b32.xlu0 %v341, 40
        %v1164 = vpop.permute.xlu0 %1163
        %v1167 = vsel %vm351, %v1160, 0
        %1169 = vmatprep.subr.mxu0 0.0
        %1170 = vmatpush1.msra.mxu0 0.0
        %1171 = vmatprep.subr.mxu0 0.0
        %1172 = vmatpush1.msra.mxu0 0.0
        %1173 = vmatprep.subr.mxu0 0.0
        %1174 = vmatpush1.msra.mxu0 0.0
        %1175 = vmatprep.subr.mxu0 0.0
        %1176 = vmatpush1.msra.mxu0 0.0
        %1177 = vmatprep.subr.mxu0 0.0
        %1178 = vmatpush1.msra.mxu0 0.0
        %1179 = vmatprep.subr.mxu0 0.0
        %1180 = vmatpush1.msra.mxu0 0.0
        %1181 = vmatprep.subr.mxu0 0.0
        %1182 = vmatpush1.msra.mxu0 0.0
        %1183 = vmatprep.subr.mxu0 0.0
        %1184 = vmatpush1.msra.mxu0 0.0
        %1185 = vmatprep.subr.mxu0 0.0
        %1186 = vmatpush1.msra.mxu0 0.0
        %1187 = vmatprep.subr.mxu0 0.0
        %1188 = vmatpush1.msra.mxu0 0.0
        %1189 = vmatprep.subr.mxu0 0.0
        %1190 = vmatpush1.msra.mxu0 0.0
        %1191 = vmatprep.subr.mxu0 0.0
        %1192 = vmatpush1.msra.mxu0 0.0
        %1193 = vmatprep.subr.mxu0 0.0
        %1194 = vmatpush1.msra.mxu0 0.0
        %1195 = vmatprep.subr.mxu0 0.0
        %1196 = vmatpush1.msra.mxu0 0.0
        %1197 = vmatprep.subr.mxu0 0.0
        %1198 = vmatpush1.msra.mxu0 0.0
        %1199 = vmatprep.subr.mxu0 0.0
        %1200 = vmatpush1.msra.mxu0 %v1164
        %1201 = vmatprep.subr.mxu0 0.0
        %1202 = vmatpush2.msra.mxu0 0.0
        %1203 = vmatprep.subr.mxu0 0.0
        %1204 = vmatpush2.msra.mxu0 0.0
        %1205 = vmatprep.subr.mxu0 0.0
        %1206 = vmatpush2.msra.mxu0 0.0
        %1207 = vmatprep.subr.mxu0 0.0
        %1208 = vmatpush2.msra.mxu0 0.0
        %1209 = vmatprep.subr.mxu0 0.0
        %1210 = vmatpush2.msra.mxu0 0.0
        %1211 = vmatprep.subr.mxu0 0.0
        %1212 = vmatpush2.msra.mxu0 0.0
        %1213 = vmatprep.subr.mxu0 0.0
        %1214 = vmatpush2.msra.mxu0 0.0
        %1215 = vmatprep.subr.mxu0 0.0
        %1216 = vmatpush2.msra.mxu0 0.0
        %1217 = vmatprep.subr.mxu0 0.0
        %1218 = vmatpush2.msra.mxu0 0.0
        %1219 = vmatprep.subr.mxu0 0.0
        %1220 = vmatpush2.msra.mxu0 0.0
        %1221 = vmatprep.subr.mxu0 0.0
        %1222 = vmatpush2.msra.mxu0 0.0
        %1223 = vmatprep.subr.mxu0 0.0
        %1224 = vmatpush2.msra.mxu0 0.0
        %1225 = vmatprep.subr.mxu0 0.0
        %1226 = vmatpush2.msra.mxu0 0.0
        %1227 = vmatprep.subr.mxu0 0.0
        %1228 = vmatpush2.msra.mxu0 0.0
        %1229 = vmatprep.subr.mxu0 0.0
        %1230 = vmatpush2.msra.mxu0 0.0
        %1231 = vmatprep.subr.mxu0 0.0
        %1232 = vmatpush2.msra.mxu0 0.0
        %1233 = vmatprep.mubr.f32.mxu0 0.0
        %1234 = vmatmul.mubr.f32.gmra.mxu0 %v1167
        %v1235 = vpop.f32.mrf.mxu0
        %v1236 = vadd.f32 0.0, %v1235
        %v1237 = vpop.f32.mrf.mxu0
        %1238 = vdwg.mxu0
        %v1240 = vsel %vm351, %v1236, 0
        %1242 = vmatprep.subr.mxu0 0.0
        %1243 = vmatpush1.msra.mxu0 0.0
        %1244 = vmatprep.subr.mxu0 0.0
        %1245 = vmatpush1.msra.mxu0 0.0
        %1246 = vmatprep.subr.mxu0 0.0
        %1247 = vmatpush1.msra.mxu0 0.0
        %1248 = vmatprep.subr.mxu0 0.0
        %1249 = vmatpush1.msra.mxu0 0.0
        %1250 = vmatprep.subr.mxu0 0.0
        %1251 = vmatpush1.msra.mxu0 0.0
        %1252 = vmatprep.subr.mxu0 0.0
        %1253 = vmatpush1.msra.mxu0 0.0
        %1254 = vmatprep.subr.mxu0 0.0
        %1255 = vmatpush1.msra.mxu0 0.0
        %1256 = vmatprep.subr.mxu0 0.0
        %1257 = vmatpush1.msra.mxu0 0.0
        %1258 = vmatprep.subr.mxu0 0.0
        %1259 = vmatpush1.msra.mxu0 0.0
        %1260 = vmatprep.subr.mxu0 0.0
        %1261 = vmatpush1.msra.mxu0 0.0
        %1262 = vmatprep.subr.mxu0 0.0
        %1263 = vmatpush1.msra.mxu0 0.0
        %1264 = vmatprep.subr.mxu0 0.0
        %1265 = vmatpush1.msra.mxu0 0.0
        %1266 = vmatprep.subr.mxu0 0.0
        %1267 = vmatpush1.msra.mxu0 0.0
        %1268 = vmatprep.subr.mxu0 0.0
        %1269 = vmatpush1.msra.mxu0 0.0
        %1270 = vmatprep.subr.mxu0 0.0
        %1271 = vmatpush1.msra.mxu0 0.0
        %1272 = vmatprep.subr.mxu0 0.0
        %1273 = vmatpush1.msra.mxu0 %v347
        %1274 = vmatprep.subr.mxu0 0.0
        %1275 = vmatpush2.msra.mxu0 0.0
        %1276 = vmatprep.subr.mxu0 0.0
        %1277 = vmatpush2.msra.mxu0 0.0
        %1278 = vmatprep.subr.mxu0 0.0
        %1279 = vmatpush2.msra.mxu0 0.0
        %1280 = vmatprep.subr.mxu0 0.0
        %1281 = vmatpush2.msra.mxu0 0.0
        %1282 = vmatprep.subr.mxu0 0.0
        %1283 = vmatpush2.msra.mxu0 0.0
        %1284 = vmatprep.subr.mxu0 0.0
        %1285 = vmatpush2.msra.mxu0 0.0
        %1286 = vmatprep.subr.mxu0 0.0
        %1287 = vmatpush2.msra.mxu0 0.0
        %1288 = vmatprep.subr.mxu0 0.0
        %1289 = vmatpush2.msra.mxu0 0.0
        %1290 = vmatprep.subr.mxu0 0.0
        %1291 = vmatpush2.msra.mxu0 0.0
        %1292 = vmatprep.subr.mxu0 0.0
        %1293 = vmatpush2.msra.mxu0 0.0
        %1294 = vmatprep.subr.mxu0 0.0
        %1295 = vmatpush2.msra.mxu0 0.0
        %1296 = vmatprep.subr.mxu0 0.0
        %1297 = vmatpush2.msra.mxu0 0.0
        %1298 = vmatprep.subr.mxu0 0.0
        %1299 = vmatpush2.msra.mxu0 0.0
        %1300 = vmatprep.subr.mxu0 0.0
        %1301 = vmatpush2.msra.mxu0 0.0
        %1302 = vmatprep.subr.mxu0 0.0
        %1303 = vmatpush2.msra.mxu0 0.0
        %1304 = vmatprep.subr.mxu0 0.0
        %1305 = vmatpush2.msra.mxu0 0.0
        %1306 = vmatprep.mubr.f32.mxu0 0.0
        %1307 = vmatmul.mubr.f32.gmra.mxu0 %v1240
        %v1308 = vpop.f32.mrf.mxu0
        %v1309 = vadd.f32 0.0, %v1308
        %v1310 = vpop.f32.mrf.mxu0
        %1311 = vdwg.mxu0
        %v1312 = vadd.f32 %v1070, %v1309
        %v1313 = vld [vmem:[%s4] sm:$0x1]
        %v1315 = vlaneseq
        %v1316 = vshrl.u32 %v1315, 7
        %v1317 = vsub.s32 0, %v1316
        %v1318 = vrot.slane %v1313, %v1317
        %v1320 = vadd.f32 %v1312, %v1318
        %1321 = vst.msk [vmem:[%s246] sm:$0xff] %vm270, %v1320
        %s1322 = sand.u32 %s142, 1
        %s1323 = scalar_lea.sflag [#allocation3], %s1322
        %s1324 = sand.u32 %s142, 1
        %s1325 = smul.addr %s1324, 8
        %s1326 = scalar_lea.vmem [#allocation2], %s1325
        %s1327 = sand.u32 %s168, 1
        %s1328 = scalar_lea.sflag [#allocation5], %s1327
        %s1329 = sand.u32 %s168, 1
        %s1330 = smul.addr %s1329, 32
        %s1331 = scalar_lea.vmem [#allocation4], %s1330
        // Predicated region
        $region41: #{multi_head_attention.1} parent=39 // pred_check
          %p1332 = pneg %p152
        $region42: #{multi_head_attention.1} parent=39 // pred_check_branch
          %1334 = sbr.rel (%p1332) target = $region44
        $region43: #{multi_head_attention.1} parent=39 // pred_region
          %s1336 = ssub.s32 128, 128
          %1337 = vsyncadd %s1323, %s1336
          %s1338 = smul.addr %s24, 128
          %s1339 = scalar_lea.hbm %s5, %s1338
          %s1341 = sshll.u32 %s1326, 4
          %s1342 = int_to_ptr.vmem [resolvable:$true] %s1341
          %1344 = dma.vmem_to_hbm [thread:$0]  %s1342, 128, %s1339, %s1323
        $region44: #{multi_head_attention.1} parent=39 // pred_fallthru
          _
        // Predicated region
        $region45: #{multi_head_attention.1} parent=39 // pred_check
          %p1345 = pneg %p178
        $region46: #{multi_head_attention.1} parent=39 // pred_check_branch
          %1347 = sbr.rel (%p1345) target = $region48
        $region47: #{multi_head_attention.1} parent=39 // pred_region
          %s1349 = ssub.s32 512, 512
          %1350 = vsyncadd %s1328, %s1349
          %s1351 = smul.addr %s24, 4
          %s1352 = smul.addr %s1351, 128
          %s1353 = scalar_lea.hbm %s6, %s1352
          %s1354 = sshll.u32 %s1331, 4
          %s1355 = int_to_ptr.vmem [resolvable:$true] %s1354
          %1360 = dma.vmem_to_hbm [thread:$0]  %s1355, 512, %s1353, %s1328, 128, 128, 8
        $region48: #{multi_head_attention.1} parent=39 // pred_fallthru
          _
      $region40: #{multi_head_attention.1} parent=5 // pred_fallthru
        _
      %p1361 = scmp.le.s32.totalorder 2, %s19
      // Predicated region
      $region49: #{multi_head_attention.1} parent=5 // pred_check
        %p1362 = pneg %p1361
      $region50: #{multi_head_attention.1} parent=5 // pred_check_branch
        %1364 = sbr.rel (%p1362) target = $region52
      $region51: #{multi_head_attention.1} parent=5 // pred_region
        %s1365 = ssub.s32 %s19, 2
        // Predicated region
        $region53: #{multi_head_attention.1} parent=51 // pred_check
          %p1366 = pneg %p158
        $region54: #{multi_head_attention.1} parent=51 // pred_check_branch
          %1368 = sbr.rel (%p1366) target = $region56
        $region55: #{multi_head_attention.1} parent=51 // pred_region
          %s1369 = sand.u32 %s143, 1
          %s1370 = scalar_lea.sflag [#allocation3], %s1369
          %s1371 = sand.u32 %s143, 1
          %s1372 = smul.addr %s1371, 8
          %s1373 = scalar_lea.vmem [#allocation2], %s1372
          %1374 = dma.done %s1370, 128
        $region56: #{multi_head_attention.1} parent=51 // pred_fallthru
          _
        // Predicated region
        $region57: #{multi_head_attention.1} parent=51 // pred_check
          %p1375 = pneg %p184
        $region58: #{multi_head_attention.1} parent=51 // pred_check_branch
          %1377 = sbr.rel (%p1375) target = $region60
        $region59: #{multi_head_attention.1} parent=51 // pred_region
          %s1378 = sand.u32 %s169, 1
          %s1379 = scalar_lea.sflag [#allocation5], %s1378
          %s1380 = sand.u32 %s169, 1
          %s1381 = smul.addr %s1380, 32
          %s1382 = scalar_lea.vmem [#allocation4], %s1381
          %1383 = dma.done %s1379, 512
        $region60: #{multi_head_attention.1} parent=51 // pred_fallthru
          _
      $region52: #{multi_head_attention.1} parent=5 // pred_fallthru
        _
    $region6: #{multi_head_attention.1} parent=1 // loop_footer
      %s23 = sadd.s32 1, %s19
    $region7: #{multi_head_attention.1} parent=1 // loop_footer_branch
      %18 = sbr.rel target = $region3
    $region8: #{multi_head_attention.1} parent=1 // loop_exit
      _
    %1384 = vsyncpa [#allocation3], 1
    %s1385 = scalar_lea.sflag [#allocation3], 1
    %1386 = vsyncpa %s1385, 1
    %1387 = vsyncpa [#allocation5], 1
    %s1388 = scalar_lea.sflag [#allocation5], 1
    %1389 = vsyncpa %s1388, 1

</llo_original>
